<compile_context>
chip_gen: v7x
topology: tpu7x:2x2x1
jax: 0.10.0
libtpu: 0.0.40
codegen_flags: <defaults>
</compile_context>

<pallas_src>
import math
import functools

import numpy as np
import jax
import jax.numpy as jnp
from jax.experimental import pallas as pl
from jax.experimental.pallas import tpu as pltpu


def mha_kernel(k_ref, q_ref, v_ref, wk_ref, wq_ref, wv_ref, wo_ref, bo_ref,
               o_ref, concat_ref, *, n_heads, head_dim, bt, s_k, s_q):
    E = n_heads * head_dim
    r_q = bt * s_q
    r_k = bt * s_k

    # Flatten the batch tile: (bt, S, E) -> (bt*S, E); last (lane) dim unchanged.
    k_flat = k_ref[...].reshape(r_k, E)
    q_flat = q_ref[...].reshape(r_q, E)
    v_flat = v_ref[...].reshape(r_k, E)

    # Fused per-head projections: one full-E matmul each (block-diagonal weights,
    # built host-side; 1/sqrt(head_dim) already folded into the query weight).
    k_proj = jnp.dot(k_flat, wk_ref[...], preferred_element_type=jnp.float32)
    q_proj = jnp.dot(q_flat, wq_ref[...], preferred_element_type=jnp.float32)
    v_proj = jnp.dot(v_flat, wv_ref[...], preferred_element_type=jnp.float32)

    # Head-major views, combined (batch, head) axis g = b * n_heads + h.
    def head_major(x, s):
        return jnp.stack(
            [x[b * s:(b + 1) * s, h * head_dim:(h + 1) * head_dim]
             for b in range(bt) for h in range(n_heads)], axis=0)

    q_hm = head_major(q_proj, s_q)   # (G, s_q, Dh)
    k_hm = head_major(k_proj, s_k)   # (G, s_k, Dh)
    v_hm = head_major(v_proj, s_k)   # (G, s_k, Dh)

    # Scaled dot-product attention, batched over all (batch, head) pairs.
    scores = jnp.einsum('gqd,gkd->gqk', q_hm, k_hm,
                        preferred_element_type=jnp.float32)      # (G, s_q, s_k)
    # TODO(synk): optional attention mask (mask == 0 -> -1e9) would be applied
    #             here; module default (mask=None) is what is implemented.
    scores = scores - jnp.max(scores, axis=-1, keepdims=True)
    p = jnp.exp(scores)
    p = p * pl.reciprocal(jnp.sum(p, axis=-1, keepdims=True), approx=True)

    ctx = jnp.einsum('gqk,gkd->gqd', p, v_hm,
                     preferred_element_type=jnp.float32)         # (G, s_q, Dh)

    # Re-interleave heads into the (bt*s_q, E) "concat" layout in VMEM scratch.
    for b in range(bt):
        for h in range(n_heads):
            concat_ref[b * s_q:(b + 1) * s_q,
                       h * head_dim:(h + 1) * head_dim] = ctx[b * n_heads + h]

    # Output projection + bias on the whole batch tile at once.
    out = jnp.dot(concat_ref[...], wo_ref[...],
                  preferred_element_type=jnp.float32) + bo_ref[...]
    o_ref[...] = out.reshape(o_ref.shape).astype(o_ref.dtype)


def _pick_batch_tile(batch, seq_q, target_rows=128, max_tile=8):
    """Largest divisor of `batch` (<= max_tile) whose row count stays near target."""
    best = 1
    for d in range(1, batch + 1):
        if batch % d == 0 and d <= max_tile and d * seq_q <= max(target_rows, seq_q):
            best = d
    return best


def multi_head_attention(key, query, value, wq, wk, wv, wo, bo, *, n_heads):
    """key/query/value: (B, S, E) float32. Weights in PyTorch nn.Linear (out, in) layout."""
    B, S_k, E = key.shape
    S_q = query.shape[1]
    head_dim = E // n_heads
    scale = 1.0 / math.sqrt(head_dim)

    # Host-side glue: block-diagonal (E, E) projection weights in (in, out) layout
    # (exact because the per-head weight is shared); scale folded into Wq.
    eye = jnp.eye(n_heads, dtype=key.dtype)
    wk_bd = jnp.kron(eye, wk.T)
    wq_bd = jnp.kron(eye, wq.T) * scale
    wv_bd = jnp.kron(eye, wv.T)
    wo_t = wo.T                       # (E, E), (in, out)
    bo_2d = bo.reshape(1, E)

    bt = _pick_batch_tile(B, S_q)     # batch elements per grid step
    r_q = bt * S_q

    kernel = functools.partial(mha_kernel, n_heads=n_heads, head_dim=head_dim,
                               bt=bt, s_k=S_k, s_q=S_q)

    return pl.pallas_call(
        kernel,
        out_shape=jax.ShapeDtypeStruct((B, S_q, E), query.dtype),
        grid_spec=pltpu.PrefetchScalarGridSpec(
            num_scalar_prefetch=0,
            grid=(B // bt,),
            in_specs=[
                pl.BlockSpec((bt, S_k, E), lambda b: (b, 0, 0)),   # key
                pl.BlockSpec((bt, S_q, E), lambda b: (b, 0, 0)),   # query
                pl.BlockSpec((bt, S_k, E), lambda b: (b, 0, 0)),   # value
                pl.BlockSpec((E, E), lambda b: (0, 0)),            # Wk block-diag
                pl.BlockSpec((E, E), lambda b: (0, 0)),            # Wq block-diag (scaled)
                pl.BlockSpec((E, E), lambda b: (0, 0)),            # Wv block-diag
                pl.BlockSpec((E, E), lambda b: (0, 0)),            # Wo^T
                pl.BlockSpec((1, E), lambda b: (0, 0)),            # bias
            ],
            out_specs=pl.BlockSpec((bt, S_q, E), lambda b: (b, 0, 0)),
            scratch_shapes=[pltpu.VMEM((r_q, E), jnp.float32)],    # concat buffer
        ),
        compiler_params=pltpu.CompilerParams(dimension_semantics=("parallel",)),
    )(key, query, value, wk_bd, wq_bd, wv_bd, wo_t, bo_2d)


def reference(key, query, value, wq, wk, wv, wo, bo, *, n_heads):
    """Pure-JAX replica of the PyTorch forward (mask=None)."""
    B, S_k, E = key.shape
    S_q = query.shape[1]
    Dh = E // n_heads
    k = key.reshape(B, S_k, n_heads, Dh) @ wk.T
    q = query.reshape(B, S_q, n_heads, Dh) @ wq.T
    v = value.reshape(B, S_k, n_heads, Dh) @ wv.T
    q = q.transpose(0, 2, 1, 3)
    k = k.transpose(0, 2, 1, 3)
    v = v.transpose(0, 2, 1, 3)
    prod = jnp.einsum('bhqd,bhkd->bhqk', q, k) / math.sqrt(Dh)
    scores = jax.nn.softmax(prod, axis=-1)
    out = jnp.einsum('bhqk,bhkd->bhqd', scores, v)
    concat = out.transpose(0, 2, 1, 3).reshape(B, S_q, E)
    return concat @ wo.T + bo


if __name__ == "__main__":
    # Small shapes consistent with the module: embed_dim=32, n_heads=4 -> head_dim=8.
    B, S, E, H = 2, 8, 32, 4
    Dh = E // H

    root = jax.random.PRNGKey(0)
    kk, kq, kv_, kwq, kwk, kwv, kwo, kbo = jax.random.split(root, 8)

    key   = jax.random.normal(kk,  (B, S, E), dtype=jnp.float32)
    query = jax.random.normal(kq,  (B, S, E), dtype=jnp.float32)
    value = jax.random.normal(kv_, (B, S, E), dtype=jnp.float32)

    # PyTorch nn.Linear layout: (out_features, in_features).
    wq = jax.random.normal(kwq, (Dh, Dh), dtype=jnp.float32) * 0.1
    wk = jax.random.normal(kwk, (Dh, Dh), dtype=jnp.float32) * 0.1
    wv = jax.random.normal(kwv, (Dh, Dh), dtype=jnp.float32) * 0.1
    wo = jax.random.normal(kwo, (E, E),  dtype=jnp.float32) * 0.1
    bo = jax.random.normal(kbo, (E,),    dtype=jnp.float32) * 0.1

    out = multi_head_attention(key, query, value, wq, wk, wv, wo, bo, n_heads=H)
    out = jax.block_until_ready(out)

    ref = reference(key, query, value, wq, wk, wv, wo, bo, n_heads=H)
    # Tolerance relaxed slightly vs. f32-exact because the softmax denominator
    # uses the EUP approximate reciprocal (pl.reciprocal(..., approx=True)).
    np.testing.assert_allclose(np.asarray(out), np.asarray(ref), rtol=1e-3, atol=1e-3)

    print("KERNEL_OK")
</pallas_src>

<mosaic_0001>
module attributes {stable_mosaic.version = 11 : i64} {
  func.func @mha_kernel(%arg0: i32, %arg1: memref<2x8x32xf32, #tpu.memory_space<vmem>>, %arg2: memref<2x8x32xf32, #tpu.memory_space<vmem>>, %arg3: memref<2x8x32xf32, #tpu.memory_space<vmem>>, %arg4: memref<32x32xf32, #tpu.memory_space<vmem>>, %arg5: memref<32x32xf32, #tpu.memory_space<vmem>>, %arg6: memref<32x32xf32, #tpu.memory_space<vmem>>, %arg7: memref<32x32xf32, #tpu.memory_space<vmem>>, %arg8: memref<1x32xf32, #tpu.memory_space<vmem>>, %arg9: memref<2x8x32xf32, #tpu.memory_space<vmem>>, %arg10: memref<16x32xf32, #tpu.memory_space<vmem>>) attributes {dimension_semantics = [#tpu.dimension_semantics<parallel>], iteration_bounds = array<i64: 1>, scalar_prefetch = 0 : i64, scratch_operands = 1 : i64, tpu.core_type = #tpu.core_type<tc>, window_params = [{transform_indices = @transform_0, window_bounds = array<i64: 2, 8, 32>}, {transform_indices = @transform_1, window_bounds = array<i64: 2, 8, 32>}, {transform_indices = @transform_2, window_bounds = array<i64: 2, 8, 32>}, {pipeline_mode = #tpu.pipeline_mode<synchronous>, transform_indices = @transform_3, window_bounds = array<i64: 32, 32>}, {pipeline_mode = #tpu.pipeline_mode<synchronous>, transform_indices = @transform_4, window_bounds = array<i64: 32, 32>}, {pipeline_mode = #tpu.pipeline_mode<synchronous>, transform_indices = @transform_5, window_bounds = array<i64: 32, 32>}, {pipeline_mode = #tpu.pipeline_mode<synchronous>, transform_indices = @transform_6, window_bounds = array<i64: 32, 32>}, {pipeline_mode = #tpu.pipeline_mode<synchronous>, transform_indices = @transform_7, window_bounds = array<i64: 1, 32>}, {transform_indices = @transform_8, window_bounds = array<i64: 2, 8, 32>}]} {
    %c0 = arith.constant 0 : index
    %c0_0 = arith.constant 0 : index
    %c0_1 = arith.constant 0 : index
    %0 = vector.load %arg1[%c0, %c0_0, %c0_1] : memref<2x8x32xf32, #tpu.memory_space<vmem>>, vector<2x8x32xf32>
    %1 = vector.shape_cast %0 : vector<2x8x32xf32> to vector<16x32xf32>
    %c0_2 = arith.constant 0 : index
    %c0_3 = arith.constant 0 : index
    %c0_4 = arith.constant 0 : index
    %2 = vector.load %arg2[%c0_2, %c0_3, %c0_4] : memref<2x8x32xf32, #tpu.memory_space<vmem>>, vector<2x8x32xf32>
    %3 = vector.shape_cast %2 : vector<2x8x32xf32> to vector<16x32xf32>
    %c0_5 = arith.constant 0 : index
    %c0_6 = arith.constant 0 : index
    %c0_7 = arith.constant 0 : index
    %4 = vector.load %arg3[%c0_5, %c0_6, %c0_7] : memref<2x8x32xf32, #tpu.memory_space<vmem>>, vector<2x8x32xf32>
    %5 = vector.shape_cast %4 : vector<2x8x32xf32> to vector<16x32xf32>
    %c0_8 = arith.constant 0 : index
    %c0_9 = arith.constant 0 : index
    %6 = vector.load %arg4[%c0_8, %c0_9] : memref<32x32xf32, #tpu.memory_space<vmem>>, vector<32x32xf32>
    %cst = arith.constant dense<0.000000e+00> : vector<16x32xf32>
    %7 = tpu.matmul %1, %6, %cst {dimension_numbers = #tpu.dot_dimension_numbers<[1], [0], [0], [1], [0, 0, 1, 1], [], []>} : vector<16x32xf32>, vector<32x32xf32>, vector<16x32xf32> -> vector<16x32xf32>
    %c0_10 = arith.constant 0 : index
    %c0_11 = arith.constant 0 : index
    %8 = vector.load %arg5[%c0_10, %c0_11] : memref<32x32xf32, #tpu.memory_space<vmem>>, vector<32x32xf32>
    %cst_12 = arith.constant dense<0.000000e+00> : vector<16x32xf32>
    %9 = tpu.matmul %3, %8, %cst_12 {dimension_numbers = #tpu.dot_dimension_numbers<[1], [0], [0], [1], [0, 0, 1, 1], [], []>} : vector<16x32xf32>, vector<32x32xf32>, vector<16x32xf32> -> vector<16x32xf32>
    %c0_13 = arith.constant 0 : index
    %c0_14 = arith.constant 0 : index
    %10 = vector.load %arg6[%c0_13, %c0_14] : memref<32x32xf32, #tpu.memory_space<vmem>>, vector<32x32xf32>
    %cst_15 = arith.constant dense<0.000000e+00> : vector<16x32xf32>
    %11 = tpu.matmul %5, %10, %cst_15 {dimension_numbers = #tpu.dot_dimension_numbers<[1], [0], [0], [1], [0, 0, 1, 1], [], []>} : vector<16x32xf32>, vector<32x32xf32>, vector<16x32xf32> -> vector<16x32xf32>
    %12 = vector.extract_strided_slice %9 {offsets = [0, 0], sizes = [8, 8], strides = [1, 1]} : vector<16x32xf32> to vector<8x8xf32>
    %13 = vector.extract_strided_slice %9 {offsets = [0, 8], sizes = [8, 8], strides = [1, 1]} : vector<16x32xf32> to vector<8x8xf32>
    %14 = vector.extract_strided_slice %9 {offsets = [0, 16], sizes = [8, 8], strides = [1, 1]} : vector<16x32xf32> to vector<8x8xf32>
    %15 = vector.extract_strided_slice %9 {offsets = [0, 24], sizes = [8, 8], strides = [1, 1]} : vector<16x32xf32> to vector<8x8xf32>
    %16 = vector.extract_strided_slice %9 {offsets = [8, 0], sizes = [8, 8], strides = [1, 1]} : vector<16x32xf32> to vector<8x8xf32>
    %17 = vector.extract_strided_slice %9 {offsets = [8, 8], sizes = [8, 8], strides = [1, 1]} : vector<16x32xf32> to vector<8x8xf32>
    %18 = vector.extract_strided_slice %9 {offsets = [8, 16], sizes = [8, 8], strides = [1, 1]} : vector<16x32xf32> to vector<8x8xf32>
    %19 = vector.extract_strided_slice %9 {offsets = [8, 24], sizes = [8, 8], strides = [1, 1]} : vector<16x32xf32> to vector<8x8xf32>
    %20 = vector.shape_cast %12 : vector<8x8xf32> to vector<1x8x8xf32>
    %21 = vector.shape_cast %13 : vector<8x8xf32> to vector<1x8x8xf32>
    %22 = vector.shape_cast %14 : vector<8x8xf32> to vector<1x8x8xf32>
    %23 = vector.shape_cast %15 : vector<8x8xf32> to vector<1x8x8xf32>
    %24 = vector.shape_cast %16 : vector<8x8xf32> to vector<1x8x8xf32>
    %25 = vector.shape_cast %17 : vector<8x8xf32> to vector<1x8x8xf32>
    %26 = vector.shape_cast %18 : vector<8x8xf32> to vector<1x8x8xf32>
    %27 = vector.shape_cast %19 : vector<8x8xf32> to vector<1x8x8xf32>
    %28 = tpu.concatenate %20, %21, %22, %23, %24, %25, %26, %27 in 0 : vector<1x8x8xf32>, vector<1x8x8xf32>, vector<1x8x8xf32>, vector<1x8x8xf32>, vector<1x8x8xf32>, vector<1x8x8xf32>, vector<1x8x8xf32>, vector<1x8x8xf32> -> vector<8x8x8xf32>
    %29 = vector.extract_strided_slice %7 {offsets = [0, 0], sizes = [8, 8], strides = [1, 1]} : vector<16x32xf32> to vector<8x8xf32>
    %30 = vector.extract_strided_slice %7 {offsets = [0, 8], sizes = [8, 8], strides = [1, 1]} : vector<16x32xf32> to vector<8x8xf32>
    %31 = vector.extract_strided_slice %7 {offsets = [0, 16], sizes = [8, 8], strides = [1, 1]} : vector<16x32xf32> to vector<8x8xf32>
    %32 = vector.extract_strided_slice %7 {offsets = [0, 24], sizes = [8, 8], strides = [1, 1]} : vector<16x32xf32> to vector<8x8xf32>
    %33 = vector.extract_strided_slice %7 {offsets = [8, 0], sizes = [8, 8], strides = [1, 1]} : vector<16x32xf32> to vector<8x8xf32>
    %34 = vector.extract_strided_slice %7 {offsets = [8, 8], sizes = [8, 8], strides = [1, 1]} : vector<16x32xf32> to vector<8x8xf32>
    %35 = vector.extract_strided_slice %7 {offsets = [8, 16], sizes = [8, 8], strides = [1, 1]} : vector<16x32xf32> to vector<8x8xf32>
    %36 = vector.extract_strided_slice %7 {offsets = [8, 24], sizes = [8, 8], strides = [1, 1]} : vector<16x32xf32> to vector<8x8xf32>
    %37 = vector.shape_cast %29 : vector<8x8xf32> to vector<1x8x8xf32>
    %38 = vector.shape_cast %30 : vector<8x8xf32> to vector<1x8x8xf32>
    %39 = vector.shape_cast %31 : vector<8x8xf32> to vector<1x8x8xf32>
    %40 = vector.shape_cast %32 : vector<8x8xf32> to vector<1x8x8xf32>
    %41 = vector.shape_cast %33 : vector<8x8xf32> to vector<1x8x8xf32>
    %42 = vector.shape_cast %34 : vector<8x8xf32> to vector<1x8x8xf32>
    %43 = vector.shape_cast %35 : vector<8x8xf32> to vector<1x8x8xf32>
    %44 = vector.shape_cast %36 : vector<8x8xf32> to vector<1x8x8xf32>
    %45 = tpu.concatenate %37, %38, %39, %40, %41, %42, %43, %44 in 0 : vector<1x8x8xf32>, vector<1x8x8xf32>, vector<1x8x8xf32>, vector<1x8x8xf32>, vector<1x8x8xf32>, vector<1x8x8xf32>, vector<1x8x8xf32>, vector<1x8x8xf32> -> vector<8x8x8xf32>
    %46 = vector.extract_strided_slice %11 {offsets = [0, 0], sizes = [8, 8], strides = [1, 1]} : vector<16x32xf32> to vector<8x8xf32>
    %47 = vector.extract_strided_slice %11 {offsets = [0, 8], sizes = [8, 8], strides = [1, 1]} : vector<16x32xf32> to vector<8x8xf32>
    %48 = vector.extract_strided_slice %11 {offsets = [0, 16], sizes = [8, 8], strides = [1, 1]} : vector<16x32xf32> to vector<8x8xf32>
    %49 = vector.extract_strided_slice %11 {offsets = [0, 24], sizes = [8, 8], strides = [1, 1]} : vector<16x32xf32> to vector<8x8xf32>
    %50 = vector.extract_strided_slice %11 {offsets = [8, 0], sizes = [8, 8], strides = [1, 1]} : vector<16x32xf32> to vector<8x8xf32>
    %51 = vector.extract_strided_slice %11 {offsets = [8, 8], sizes = [8, 8], strides = [1, 1]} : vector<16x32xf32> to vector<8x8xf32>
    %52 = vector.extract_strided_slice %11 {offsets = [8, 16], sizes = [8, 8], strides = [1, 1]} : vector<16x32xf32> to vector<8x8xf32>
    %53 = vector.extract_strided_slice %11 {offsets = [8, 24], sizes = [8, 8], strides = [1, 1]} : vector<16x32xf32> to vector<8x8xf32>
    %54 = vector.shape_cast %46 : vector<8x8xf32> to vector<1x8x8xf32>
    %55 = vector.shape_cast %47 : vector<8x8xf32> to vector<1x8x8xf32>
    %56 = vector.shape_cast %48 : vector<8x8xf32> to vector<1x8x8xf32>
    %57 = vector.shape_cast %49 : vector<8x8xf32> to vector<1x8x8xf32>
    %58 = vector.shape_cast %50 : vector<8x8xf32> to vector<1x8x8xf32>
    %59 = vector.shape_cast %51 : vector<8x8xf32> to vector<1x8x8xf32>
    %60 = vector.shape_cast %52 : vector<8x8xf32> to vector<1x8x8xf32>
    %61 = vector.shape_cast %53 : vector<8x8xf32> to vector<1x8x8xf32>
    %62 = tpu.concatenate %54, %55, %56, %57, %58, %59, %60, %61 in 0 : vector<1x8x8xf32>, vector<1x8x8xf32>, vector<1x8x8xf32>, vector<1x8x8xf32>, vector<1x8x8xf32>, vector<1x8x8xf32>, vector<1x8x8xf32>, vector<1x8x8xf32> -> vector<8x8x8xf32>
    "tpu.trace_start"() <{level = 10 : i32, message = "gqd,gkd->gqk"}> : () -> ()
    %cst_16 = arith.constant dense<0.000000e+00> : vector<8x8x8xf32>
    %63 = tpu.matmul %28, %45, %cst_16 {dimension_numbers = #tpu.dot_dimension_numbers<[2], [2], [1], [1], [0, 0, 0, 1, 1, 1], [0], [0]>} : vector<8x8x8xf32>, vector<8x8x8xf32>, vector<8x8x8xf32> -> vector<8x8x8xf32>
    "tpu.trace_stop"() : () -> ()
    %cst_17 = arith.constant dense<0xFF800000> : vector<8x8xf32>
    %64 = vector.multi_reduction <maximumf>, %63, %cst_17 [2] : vector<8x8x8xf32> to vector<8x8xf32>
    %65 = vector.shape_cast %64 : vector<8x8xf32> to vector<8x8x1xf32>
    %66 = vector.broadcast %65 : vector<8x8x1xf32> to vector<8x8x8xf32>
    %67 = arith.subf %63, %66 : vector<8x8x8xf32>
    %68 = math.exp %67 : vector<8x8x8xf32>
    %cst_18 = arith.constant dense<0.000000e+00> : vector<8x8xf32>
    %69 = vector.multi_reduction <add>, %68, %cst_18 [2] : vector<8x8x8xf32> to vector<8x8xf32>
    %70 = vector.shape_cast %69 : vector<8x8xf32> to vector<8x8x1xf32>
    %71 = tpu.reciprocal %70 {approx = true} : vector<8x8x1xf32> -> vector<8x8x1xf32>
    %72 = vector.broadcast %71 : vector<8x8x1xf32> to vector<8x8x8xf32>
    %73 = arith.mulf %68, %72 : vector<8x8x8xf32>
    "tpu.trace_start"() <{level = 10 : i32, message = "gqk,gkd->gqd"}> : () -> ()
    %cst_19 = arith.constant dense<0.000000e+00> : vector<8x8x8xf32>
    %74 = tpu.matmul %73, %62, %cst_19 {dimension_numbers = #tpu.dot_dimension_numbers<[2], [1], [1], [2], [0, 0, 0, 1, 1, 2], [0], [0]>} : vector<8x8x8xf32>, vector<8x8x8xf32>, vector<8x8x8xf32> -> vector<8x8x8xf32>
    "tpu.trace_stop"() : () -> ()
    %75 = vector.extract_strided_slice %74 {offsets = [0, 0, 0], sizes = [1, 8, 8], strides = [1, 1, 1]} : vector<8x8x8xf32> to vector<1x8x8xf32>
    %76 = vector.shape_cast %75 : vector<1x8x8xf32> to vector<8x8xf32>
    %c0_20 = arith.constant 0 : index
    %c0_21 = arith.constant 0 : index
    %77 = vector.load %arg10[%c0_20, %c0_21] : memref<16x32xf32, #tpu.memory_space<vmem>>, vector<8x8xf32>
    tpu.vector_store %arg10[%c0_20, %c0_21], %76 {strides = array<i32>} : memref<16x32xf32, #tpu.memory_space<vmem>>, vector<8x8xf32>,
    %78 = vector.extract_strided_slice %74 {offsets = [1, 0, 0], sizes = [1, 8, 8], strides = [1, 1, 1]} : vector<8x8x8xf32> to vector<1x8x8xf32>
    %79 = vector.shape_cast %78 : vector<1x8x8xf32> to vector<8x8xf32>
    %c0_22 = arith.constant 0 : index
    %c8 = arith.constant 8 : index
    %80 = vector.load %arg10[%c0_22, %c8] : memref<16x32xf32, #tpu.memory_space<vmem>>, vector<8x8xf32>
    tpu.vector_store %arg10[%c0_22, %c8], %79 {strides = array<i32>} : memref<16x32xf32, #tpu.memory_space<vmem>>, vector<8x8xf32>,
    %81 = vector.extract_strided_slice %74 {offsets = [2, 0, 0], sizes = [1, 8, 8], strides = [1, 1, 1]} : vector<8x8x8xf32> to vector<1x8x8xf32>
    %82 = vector.shape_cast %81 : vector<1x8x8xf32> to vector<8x8xf32>
    %c0_23 = arith.constant 0 : index
    %c16 = arith.constant 16 : index
    %83 = vector.load %arg10[%c0_23, %c16] : memref<16x32xf32, #tpu.memory_space<vmem>>, vector<8x8xf32>
    tpu.vector_store %arg10[%c0_23, %c16], %82 {strides = array<i32>} : memref<16x32xf32, #tpu.memory_space<vmem>>, vector<8x8xf32>,
    %84 = vector.extract_strided_slice %74 {offsets = [3, 0, 0], sizes = [1, 8, 8], strides = [1, 1, 1]} : vector<8x8x8xf32> to vector<1x8x8xf32>
    %85 = vector.shape_cast %84 : vector<1x8x8xf32> to vector<8x8xf32>
    %c0_24 = arith.constant 0 : index
    %c24 = arith.constant 24 : index
    %86 = vector.load %arg10[%c0_24, %c24] : memref<16x32xf32, #tpu.memory_space<vmem>>, vector<8x8xf32>
    tpu.vector_store %arg10[%c0_24, %c24], %85 {strides = array<i32>} : memref<16x32xf32, #tpu.memory_space<vmem>>, vector<8x8xf32>,
    %87 = vector.extract_strided_slice %74 {offsets = [4, 0, 0], sizes = [1, 8, 8], strides = [1, 1, 1]} : vector<8x8x8xf32> to vector<1x8x8xf32>
    %88 = vector.shape_cast %87 : vector<1x8x8xf32> to vector<8x8xf32>
    %c8_25 = arith.constant 8 : index
    %c0_26 = arith.constant 0 : index
    %89 = vector.load %arg10[%c8_25, %c0_26] : memref<16x32xf32, #tpu.memory_space<vmem>>, vector<8x8xf32>
    tpu.vector_store %arg10[%c8_25, %c0_26], %88 {strides = array<i32>} : memref<16x32xf32, #tpu.memory_space<vmem>>, vector<8x8xf32>,
    %90 = vector.extract_strided_slice %74 {offsets = [5, 0, 0], sizes = [1, 8, 8], strides = [1, 1, 1]} : vector<8x8x8xf32> to vector<1x8x8xf32>
    %91 = vector.shape_cast %90 : vector<1x8x8xf32> to vector<8x8xf32>
    %c8_27 = arith.constant 8 : index
    %c8_28 = arith.constant 8 : index
    %92 = vector.load %arg10[%c8_27, %c8_28] : memref<16x32xf32, #tpu.memory_space<vmem>>, vector<8x8xf32>
    tpu.vector_store %arg10[%c8_27, %c8_28], %91 {strides = array<i32>} : memref<16x32xf32, #tpu.memory_space<vmem>>, vector<8x8xf32>,
    %93 = vector.extract_strided_slice %74 {offsets = [6, 0, 0], sizes = [1, 8, 8], strides = [1, 1, 1]} : vector<8x8x8xf32> to vector<1x8x8xf32>
    %94 = vector.shape_cast %93 : vector<1x8x8xf32> to vector<8x8xf32>
    %c8_29 = arith.constant 8 : index
    %c16_30 = arith.constant 16 : index
    %95 = vector.load %arg10[%c8_29, %c16_30] : memref<16x32xf32, #tpu.memory_space<vmem>>, vector<8x8xf32>
    tpu.vector_store %arg10[%c8_29, %c16_30], %94 {strides = array<i32>} : memref<16x32xf32, #tpu.memory_space<vmem>>, vector<8x8xf32>,
    %96 = vector.extract_strided_slice %74 {offsets = [7, 0, 0], sizes = [1, 8, 8], strides = [1, 1, 1]} : vector<8x8x8xf32> to vector<1x8x8xf32>
    %97 = vector.shape_cast %96 : vector<1x8x8xf32> to vector<8x8xf32>
    %c8_31 = arith.constant 8 : index
    %c24_32 = arith.constant 24 : index
    %98 = vector.load %arg10[%c8_31, %c24_32] : memref<16x32xf32, #tpu.memory_space<vmem>>, vector<8x8xf32>
    tpu.vector_store %arg10[%c8_31, %c24_32], %97 {strides = array<i32>} : memref<16x32xf32, #tpu.memory_space<vmem>>, vector<8x8xf32>,
    %c0_33 = arith.constant 0 : index
    %c0_34 = arith.constant 0 : index
    %99 = vector.load %arg10[%c0_33, %c0_34] : memref<16x32xf32, #tpu.memory_space<vmem>>, vector<16x32xf32>
    %c0_35 = arith.constant 0 : index
    %c0_36 = arith.constant 0 : index
    %100 = vector.load %arg7[%c0_35, %c0_36] : memref<32x32xf32, #tpu.memory_space<vmem>>, vector<32x32xf32>
    %cst_37 = arith.constant dense<0.000000e+00> : vector<16x32xf32>
    %101 = tpu.matmul %99, %100, %cst_37 {dimension_numbers = #tpu.dot_dimension_numbers<[1], [0], [0], [1], [0, 0, 1, 1], [], []>} : vector<16x32xf32>, vector<32x32xf32>, vector<16x32xf32> -> vector<16x32xf32>
    %c0_38 = arith.constant 0 : index
    %c0_39 = arith.constant 0 : index
    %102 = vector.load %arg8[%c0_38, %c0_39] : memref<1x32xf32, #tpu.memory_space<vmem>>, vector<1x32xf32>
    %103 = vector.broadcast %102 : vector<1x32xf32> to vector<16x32xf32>
    %104 = arith.addf %101, %103 : vector<16x32xf32>
    %105 = vector.shape_cast %104 : vector<16x32xf32> to vector<2x8x32xf32>
    %c0_40 = arith.constant 0 : index
    %c0_41 = arith.constant 0 : index
    %c0_42 = arith.constant 0 : index
    %106 = vector.load %arg9[%c0_40, %c0_41, %c0_42] : memref<2x8x32xf32, #tpu.memory_space<vmem>>, vector<2x8x32xf32>
    tpu.vector_store %arg9[%c0_40, %c0_41, %c0_42], %105 {strides = array<i32>} : memref<2x8x32xf32, #tpu.memory_space<vmem>>, vector<2x8x32xf32>,
    return
  }
  func.func @transform_0(%arg0: i32) -> (i32, i32, i32) {
    %c0_i32 = arith.constant 0 : i32
    %c0_i32_0 = arith.constant 0 : i32
    %c0_i32_1 = arith.constant 0 : i32
    return %arg0, %c0_i32, %c0_i32_0 : i32, i32, i32
  }
  func.func @transform_1(%arg0: i32) -> (i32, i32, i32) {
    %c0_i32 = arith.constant 0 : i32
    %c0_i32_0 = arith.constant 0 : i32
    %c0_i32_1 = arith.constant 0 : i32
    return %arg0, %c0_i32, %c0_i32_0 : i32, i32, i32
  }
  func.func @transform_2(%arg0: i32) -> (i32, i32, i32) {
    %c0_i32 = arith.constant 0 : i32
    %c0_i32_0 = arith.constant 0 : i32
    %c0_i32_1 = arith.constant 0 : i32
    return %arg0, %c0_i32, %c0_i32_0 : i32, i32, i32
  }
  func.func @transform_3(%arg0: i32) -> (i32, i32) {
    %c0_i32 = arith.constant 0 : i32
    %c0_i32_0 = arith.constant 0 : i32
    %c0_i32_1 = arith.constant 0 : i32
    return %c0_i32, %c0_i32_0 : i32, i32
  }
  func.func @transform_4(%arg0: i32) -> (i32, i32) {
    %c0_i32 = arith.constant 0 : i32
    %c0_i32_0 = arith.constant 0 : i32
    %c0_i32_1 = arith.constant 0 : i32
    return %c0_i32, %c0_i32_0 : i32, i32
  }
  func.func @transform_5(%arg0: i32) -> (i32, i32) {
    %c0_i32 = arith.constant 0 : i32
    %c0_i32_0 = arith.constant 0 : i32
    %c0_i32_1 = arith.constant 0 : i32
    return %c0_i32, %c0_i32_0 : i32, i32
  }
  func.func @transform_6(%arg0: i32) -> (i32, i32) {
    %c0_i32 = arith.constant 0 : i32
    %c0_i32_0 = arith.constant 0 : i32
    %c0_i32_1 = arith.constant 0 : i32
    return %c0_i32, %c0_i32_0 : i32, i32
  }
  func.func @transform_7(%arg0: i32) -> (i32, i32) {
    %c0_i32 = arith.constant 0 : i32
    %c0_i32_0 = arith.constant 0 : i32
    %c0_i32_1 = arith.constant 0 : i32
    return %c0_i32, %c0_i32_0 : i32, i32
  }
  func.func @transform_8(%arg0: i32) -> (i32, i32, i32) {
    %c0_i32 = arith.constant 0 : i32
    %c0_i32_0 = arith.constant 0 : i32
    %c0_i32_1 = arith.constant 0 : i32
    return %arg0, %c0_i32, %c0_i32_0 : i32, i32, i32
  }
}

</mosaic_0001>

<llo_original>
// kernel: tpu_custom_call.1
$region0: #{tpu_custom_call.1}
  #allocation0 [shape = 'u32[]', space=smem, size = 0x4, offset = 0x4, fixed_abs, tag = 'smem constant byte address 0x4 - core index']
  #allocation1 [shape = 'u32[144,128]{1,0:T(1,128)}', space=vmem, size = 0x12000, scoped, tag = 'internal scratch']
  #allocation2 [shape = 'f32[16,32]{1,0:T(8,128)}', space=vmem, size = 0x2000, scoped, tag = 'scratch operand']
  %s0 = inlined_call_operand.hbm [shape: f32[2,8,32], index: 0, kind: input, shape index: {}]
  %s1 = inlined_call_operand.hbm [shape: f32[2,8,32], index: 1, kind: input, shape index: {}]
  %s2 = inlined_call_operand.hbm [shape: f32[2,8,32], index: 2, kind: input, shape index: {}]
  %s3 = inlined_call_operand.hbm [shape: f32[32,32], index: 3, kind: input, shape index: {}]
  %s4 = inlined_call_operand.hbm [shape: f32[32,32], index: 4, kind: input, shape index: {}]
  %s5 = inlined_call_operand.hbm [shape: f32[32,32], index: 5, kind: input, shape index: {}]
  %s6 = inlined_call_operand.hbm [shape: f32[32,32], index: 6, kind: input, shape index: {}]
  %s7 = inlined_call_operand.vmem [shape: f32[1,32], index: 7, kind: input, shape index: {}]
  %s8 = inlined_call_operand.hbm [shape: f32[2,8,32], index: 8, kind: output, shape index: {}]
  %s9 = sld [smem:[#allocation0]]
  $region70: #{tpu_custom_call.1} parent=0
    _
  %s11 = ssub.s32 1, %s9
  %s12 = scalar_select 0, %s11, %s9
  $region1: #{tpu_custom_call.1} parent=0
    #allocation3 [shape = 'u8[8192]{0}', space=vmem, size = 0x2000, scoped, tag = 'input window, operand 0, single buffered']
    #allocation4 [shape = 's32[1]{0}', space=sflag, size = 0x4, scoped, tag = 'scoped memory for tpu_custom_call.1']
    #allocation5 [shape = 's32[1]{0}', space=sflag, size = 0x4, scoped, tag = 'scoped memory for tpu_custom_call.1']
    #allocation6 [shape = 'u8[8192]{0}', space=vmem, size = 0x2000, scoped, tag = 'input window, operand 1, single buffered']
    #allocation7 [shape = 's32[1]{0}', space=sflag, size = 0x4, scoped, tag = 'scoped memory for tpu_custom_call.1']
    #allocation8 [shape = 'u8[8192]{0}', space=vmem, size = 0x2000, scoped, tag = 'input window, operand 2, single buffered']
    #allocation9 [shape = 'u8[16384]{0}', space=vmem, size = 0x4000, scoped, tag = 'input window, operand 3, single buffered']
    #allocation10 [shape = 's32[1]{0}', space=sflag, size = 0x4, scoped, tag = 'scoped memory for tpu_custom_call.1']
    #allocation11 [shape = 'u8[16384]{0}', space=vmem, size = 0x4000, scoped, tag = 'input window, operand 4, single buffered']
    #allocation12 [shape = 'u8[16384]{0}', space=vmem, size = 0x4000, scoped, tag = 'input window, operand 5, single buffered']
    #allocation13 [shape = 's32[1]{0}', space=sflag, size = 0x4, scoped, tag = 'scoped memory for tpu_custom_call.1']
    #allocation14 [shape = 'u8[16384]{0}', space=vmem, size = 0x4000, scoped, tag = 'input window, operand 6, single buffered']
    #allocation15 [shape = 'u8[8192]{0}', space=vmem, size = 0x2000, scoped, tag = 'output window, operand 0, single buffered']
    %13 = vsyncpa [#allocation4], 0
    %14 = vsyncpa [#allocation7], 0
    %15 = vsyncpa [#allocation10], 0
    %16 = vsyncpa [#allocation13], 0
    %17 = vsyncpa [#allocation5], 0
    // Predicated region
    $region2: #{tpu_custom_call.1} parent=1 // pred_check
      _
    $region3: #{tpu_custom_call.1} parent=1 // pred_check_branch
      %19 = sbr.rel (0) target = $region5
    $region4: #{tpu_custom_call.1} parent=1 // pred_region
      %s21 = ssub.s32 256, 256
      %22 = vsyncadd [#allocation4], %s21
      %s23 = sshll.u32 [#allocation3], 4
      %s24 = int_to_ptr.vmem [resolvable:$true] %s23
      %29 = dma.hbm_to_vmem [thread:$0]  %s0, 256, %s24, [#allocation4], 128, 128, 8
    $region5: #{tpu_custom_call.1} parent=1 // pred_fallthru
      _
    // Predicated region
    $region6: #{tpu_custom_call.1} parent=1 // pred_check
      _
    $region7: #{tpu_custom_call.1} parent=1 // pred_check_branch
      %31 = sbr.rel (0) target = $region9
    $region8: #{tpu_custom_call.1} parent=1 // pred_region
      %s33 = ssub.s32 256, 256
      %34 = vsyncadd [#allocation7], %s33
      %s35 = sshll.u32 [#allocation6], 4
      %s36 = int_to_ptr.vmem [resolvable:$true] %s35
      %41 = dma.hbm_to_vmem [thread:$0]  %s1, 256, %s36, [#allocation7], 128, 128, 8
    $region9: #{tpu_custom_call.1} parent=1 // pred_fallthru
      _
    // Predicated region
    $region10: #{tpu_custom_call.1} parent=1 // pred_check
      _
    $region11: #{tpu_custom_call.1} parent=1 // pred_check_branch
      %43 = sbr.rel (0) target = $region13
    $region12: #{tpu_custom_call.1} parent=1 // pred_region
      %s45 = ssub.s32 256, 256
      %46 = vsyncadd [#allocation7], %s45
      %s47 = sshll.u32 [#allocation8], 4
      %s48 = int_to_ptr.vmem [resolvable:$true] %s47
      %53 = dma.hbm_to_vmem [thread:$0]  %s2, 256, %s48, [#allocation7], 128, 128, 8
    $region13: #{tpu_custom_call.1} parent=1 // pred_fallthru
      _
    // Predicated region
    $region14: #{tpu_custom_call.1} parent=1 // pred_check
      _
    $region15: #{tpu_custom_call.1} parent=1 // pred_check_branch
      %55 = sbr.rel (0) target = $region17
    $region16: #{tpu_custom_call.1} parent=1 // pred_region
      %s57 = ssub.s32 512, 512
      %58 = vsyncadd [#allocation10], %s57
      %s59 = sshll.u32 [#allocation9], 4
      %s60 = int_to_ptr.vmem [resolvable:$true] %s59
      %65 = dma.hbm_to_vmem [thread:$0]  %s3, 512, %s60, [#allocation10], 128, 128, 8
    $region17: #{tpu_custom_call.1} parent=1 // pred_fallthru
      _
    // Predicated region
    $region18: #{tpu_custom_call.1} parent=1 // pred_check
      _
    $region19: #{tpu_custom_call.1} parent=1 // pred_check_branch
      %67 = sbr.rel (0) target = $region21
    $region20: #{tpu_custom_call.1} parent=1 // pred_region
      %s69 = ssub.s32 512, 512
      %70 = vsyncadd [#allocation10], %s69
      %s71 = sshll.u32 [#allocation11], 4
      %s72 = int_to_ptr.vmem [resolvable:$true] %s71
      %77 = dma.hbm_to_vmem [thread:$0]  %s4, 512, %s72, [#allocation10], 128, 128, 8
    $region21: #{tpu_custom_call.1} parent=1 // pred_fallthru
      _
    // Predicated region
    $region22: #{tpu_custom_call.1} parent=1 // pred_check
      _
    $region23: #{tpu_custom_call.1} parent=1 // pred_check_branch
      %79 = sbr.rel (0) target = $region25
    $region24: #{tpu_custom_call.1} parent=1 // pred_region
      %s81 = ssub.s32 512, 512
      %82 = vsyncadd [#allocation13], %s81
      %s83 = sshll.u32 [#allocation12], 4
      %s84 = int_to_ptr.vmem [resolvable:$true] %s83
      %89 = dma.hbm_to_vmem [thread:$0]  %s5, 512, %s84, [#allocation13], 128, 128, 8
    $region25: #{tpu_custom_call.1} parent=1 // pred_fallthru
      _
    // Predicated region
    $region26: #{tpu_custom_call.1} parent=1 // pred_check
      _
    $region27: #{tpu_custom_call.1} parent=1 // pred_check_branch
      %91 = sbr.rel (0) target = $region29
    $region28: #{tpu_custom_call.1} parent=1 // pred_region
      %s93 = ssub.s32 512, 512
      %94 = vsyncadd [#allocation13], %s93
      %s95 = sshll.u32 [#allocation14], 4
      %s96 = int_to_ptr.vmem [resolvable:$true] %s95
      %101 = dma.hbm_to_vmem [thread:$0]  %s6, 512, %s96, [#allocation13], 128, 128, 8
    $region29: #{tpu_custom_call.1} parent=1 // pred_fallthru
      _
    // Predicated region
    $region30: #{tpu_custom_call.1} parent=1 // pred_check
      _
    $region31: #{tpu_custom_call.1} parent=1 // pred_check_branch
      %103 = sbr.rel (0) target = $region33
    $region32: #{tpu_custom_call.1} parent=1 // pred_region
      _
    $region33: #{tpu_custom_call.1} parent=1 // pred_fallthru
      _
    // Predicated region
    $region34: #{tpu_custom_call.1} parent=1 // pred_check
      _
    $region35: #{tpu_custom_call.1} parent=1 // pred_check_branch
      %105 = sbr.rel (0) target = $region37
    $region36: #{tpu_custom_call.1} parent=1 // pred_region
      %106 = dma.done [#allocation4], 256
    $region37: #{tpu_custom_call.1} parent=1 // pred_fallthru
      _
    // Predicated region
    $region38: #{tpu_custom_call.1} parent=1 // pred_check
      _
    $region39: #{tpu_custom_call.1} parent=1 // pred_check_branch
      %108 = sbr.rel (0) target = $region41
    $region40: #{tpu_custom_call.1} parent=1 // pred_region
      %109 = dma.done [#allocation7], 256
    $region41: #{tpu_custom_call.1} parent=1 // pred_fallthru
      _
    // Predicated region
    $region42: #{tpu_custom_call.1} parent=1 // pred_check
      _
    $region43: #{tpu_custom_call.1} parent=1 // pred_check_branch
      %111 = sbr.rel (0) target = $region45
    $region44: #{tpu_custom_call.1} parent=1 // pred_region
      %112 = dma.done [#allocation7], 256
    $region45: #{tpu_custom_call.1} parent=1 // pred_fallthru
      _
    // Predicated region
    $region46: #{tpu_custom_call.1} parent=1 // pred_check
      _
    $region47: #{tpu_custom_call.1} parent=1 // pred_check_branch
      %114 = sbr.rel (0) target = $region49
    $region48: #{tpu_custom_call.1} parent=1 // pred_region
      %115 = dma.done [#allocation10], 512
    $region49: #{tpu_custom_call.1} parent=1 // pred_fallthru
      _
    // Predicated region
    $region50: #{tpu_custom_call.1} parent=1 // pred_check
      _
    $region51: #{tpu_custom_call.1} parent=1 // pred_check_branch
      %117 = sbr.rel (0) target = $region53
    $region52: #{tpu_custom_call.1} parent=1 // pred_region
      %118 = dma.done [#allocation10], 512
    $region53: #{tpu_custom_call.1} parent=1 // pred_fallthru
      _
    // Predicated region
    $region54: #{tpu_custom_call.1} parent=1 // pred_check
      _
    $region55: #{tpu_custom_call.1} parent=1 // pred_check_branch
      %120 = sbr.rel (0) target = $region57
    $region56: #{tpu_custom_call.1} parent=1 // pred_region
      %121 = dma.done [#allocation13], 512
    $region57: #{tpu_custom_call.1} parent=1 // pred_fallthru
      _
    // Predicated region
    $region58: #{tpu_custom_call.1} parent=1 // pred_check
      _
    $region59: #{tpu_custom_call.1} parent=1 // pred_check_branch
      %123 = sbr.rel (0) target = $region61
    $region60: #{tpu_custom_call.1} parent=1 // pred_region
      %124 = dma.done [#allocation13], 512
    $region61: #{tpu_custom_call.1} parent=1 // pred_fallthru
      _
    %v125 = vld [vmem:[#allocation3] sm:$0xff]
    %v126 = vld [vmem:[#allocation3 + $0x8] sm:$0xff]
    %v127 = vld [vmem:[#allocation6] sm:$0xff]
    %v128 = vld [vmem:[#allocation6 + $0x8] sm:$0xff]
    %v129 = vld [vmem:[#allocation8] sm:$0xff]
    %v130 = vld [vmem:[#allocation8 + $0x8] sm:$0xff]
    %v131 = vld [vmem:[#allocation9] sm:$0xff]
    %v132 = vld [vmem:[#allocation9 + $0x8] sm:$0xff]
    %v133 = vld [vmem:[#allocation9 + $0x10] sm:$0xff]
    %v134 = vld [vmem:[#allocation9 + $0x18] sm:$0xff]
    %vm135 = vcmask 261120
    %v137 = vsel %vm135, %v125, 0
    %v140 = vsel %vm135, %v126, 0
    %142 = vmatprep.subr.mxu0 0.0
    %143 = vmatpush1.msra.mxu0 %v131
    %144 = vmatprep.subr.mxu0 0.0
    %145 = vmatpush1.msra.mxu0 %v132
    %146 = vmatprep.subr.mxu0 0.0
    %147 = vmatpush1.msra.mxu0 %v133
    %148 = vmatprep.subr.mxu0 0.0
    %149 = vmatpush1.msra.mxu0 %v134
    %150 = vmatprep.subr.mxu0 0.0
    %151 = vmatpush1.msra.mxu0 0.0
    %152 = vmatprep.subr.mxu0 0.0
    %153 = vmatpush1.msra.mxu0 0.0
    %154 = vmatprep.subr.mxu0 0.0
    %155 = vmatpush1.msra.mxu0 0.0
    %156 = vmatprep.subr.mxu0 0.0
    %157 = vmatpush1.msra.mxu0 0.0
    %158 = vmatprep.subr.mxu0 0.0
    %159 = vmatpush1.msra.mxu0 0.0
    %160 = vmatprep.subr.mxu0 0.0
    %161 = vmatpush1.msra.mxu0 0.0
    %162 = vmatprep.subr.mxu0 0.0
    %163 = vmatpush1.msra.mxu0 0.0
    %164 = vmatprep.subr.mxu0 0.0
    %165 = vmatpush1.msra.mxu0 0.0
    %166 = vmatprep.subr.mxu0 0.0
    %167 = vmatpush1.msra.mxu0 0.0
    %168 = vmatprep.subr.mxu0 0.0
    %169 = vmatpush1.msra.mxu0 0.0
    %170 = vmatprep.subr.mxu0 0.0
    %171 = vmatpush1.msra.mxu0 0.0
    %172 = vmatprep.subr.mxu0 0.0
    %173 = vmatpush1.msra.mxu0 0.0
    %174 = vmatprep.subr.mxu0 0.0
    %175 = vmatpush1.msra.mxu0 0.0
    %176 = vmatprep.subr.mxu0 0.0
    %177 = vmatpush1.msra.mxu0 0.0
    %178 = vmatprep.subr.mxu0 0.0
    %179 = vmatpush1.msra.mxu0 0.0
    %180 = vmatprep.subr.mxu0 0.0
    %181 = vmatpush1.msra.mxu0 0.0
    %182 = vmatprep.subr.mxu0 0.0
    %183 = vmatpush1.msra.mxu0 0.0
    %184 = vmatprep.subr.mxu0 0.0
    %185 = vmatpush1.msra.mxu0 0.0
    %186 = vmatprep.subr.mxu0 0.0
    %187 = vmatpush1.msra.mxu0 0.0
    %188 = vmatprep.subr.mxu0 0.0
    %189 = vmatpush1.msra.mxu0 0.0
    %190 = vmatprep.subr.mxu0 0.0
    %191 = vmatpush1.msra.mxu0 0.0
    %192 = vmatprep.subr.mxu0 0.0
    %193 = vmatpush1.msra.mxu0 0.0
    %194 = vmatprep.subr.mxu0 0.0
    %195 = vmatpush1.msra.mxu0 0.0
    %196 = vmatprep.subr.mxu0 0.0
    %197 = vmatpush1.msra.mxu0 0.0
    %198 = vmatprep.subr.mxu0 0.0
    %199 = vmatpush1.msra.mxu0 0.0
    %200 = vmatprep.subr.mxu0 0.0
    %201 = vmatpush1.msra.mxu0 0.0
    %202 = vmatprep.subr.mxu0 0.0
    %203 = vmatpush1.msra.mxu0 0.0
    %204 = vmatprep.subr.mxu0 0.0
    %205 = vmatpush1.msra.mxu0 0.0
    %206 = vmatprep.mubr.f32.mxu0 0.0
    %207 = vmatmul.mubr.f32.gmra.mrb[0].mxu0 %v137
    %v208 = vpop.f32.mrb[0].mxu0
    %v209 = vadd.f32 0.0, %v208
    %v210 = vpop.f32.mrb[0].mxu0
    %211 = vmatprep.mubr.f32.mxu0 0.0
    %212 = vmatmul.mubr.f32.gmra.mrb[0].mxu0 %v140
    %v213 = vpop.f32.mrb[0].mxu0
    %v214 = vadd.f32 0.0, %v213
    %v215 = vpop.f32.mrb[0].mxu0
    %216 = vdwg.mxu0
    %v217 = vld [vmem:[#allocation11] sm:$0xff]
    %v218 = vld [vmem:[#allocation11 + $0x8] sm:$0xff]
    %v219 = vld [vmem:[#allocation11 + $0x10] sm:$0xff]
    %v220 = vld [vmem:[#allocation11 + $0x18] sm:$0xff]
    %v222 = vsel %vm135, %v127, 0
    %v225 = vsel %vm135, %v128, 0
    %227 = vmatprep.subr.mxu0 0.0
    %228 = vmatpush1.msra.mxu0 %v217
    %229 = vmatprep.subr.mxu0 0.0
    %230 = vmatpush1.msra.mxu0 %v218
    %231 = vmatprep.subr.mxu0 0.0
    %232 = vmatpush1.msra.mxu0 %v219
    %233 = vmatprep.subr.mxu0 0.0
    %234 = vmatpush1.msra.mxu0 %v220
    %235 = vmatprep.subr.mxu0 0.0
    %236 = vmatpush1.msra.mxu0 0.0
    %237 = vmatprep.subr.mxu0 0.0
    %238 = vmatpush1.msra.mxu0 0.0
    %239 = vmatprep.subr.mxu0 0.0
    %240 = vmatpush1.msra.mxu0 0.0
    %241 = vmatprep.subr.mxu0 0.0
    %242 = vmatpush1.msra.mxu0 0.0
    %243 = vmatprep.subr.mxu0 0.0
    %244 = vmatpush1.msra.mxu0 0.0
    %245 = vmatprep.subr.mxu0 0.0
    %246 = vmatpush1.msra.mxu0 0.0
    %247 = vmatprep.subr.mxu0 0.0
    %248 = vmatpush1.msra.mxu0 0.0
    %249 = vmatprep.subr.mxu0 0.0
    %250 = vmatpush1.msra.mxu0 0.0
    %251 = vmatprep.subr.mxu0 0.0
    %252 = vmatpush1.msra.mxu0 0.0
    %253 = vmatprep.subr.mxu0 0.0
    %254 = vmatpush1.msra.mxu0 0.0
    %255 = vmatprep.subr.mxu0 0.0
    %256 = vmatpush1.msra.mxu0 0.0
    %257 = vmatprep.subr.mxu0 0.0
    %258 = vmatpush1.msra.mxu0 0.0
    %259 = vmatprep.subr.mxu0 0.0
    %260 = vmatpush1.msra.mxu0 0.0
    %261 = vmatprep.subr.mxu0 0.0
    %262 = vmatpush1.msra.mxu0 0.0
    %263 = vmatprep.subr.mxu0 0.0
    %264 = vmatpush1.msra.mxu0 0.0
    %265 = vmatprep.subr.mxu0 0.0
    %266 = vmatpush1.msra.mxu0 0.0
    %267 = vmatprep.subr.mxu0 0.0
    %268 = vmatpush1.msra.mxu0 0.0
    %269 = vmatprep.subr.mxu0 0.0
    %270 = vmatpush1.msra.mxu0 0.0
    %271 = vmatprep.subr.mxu0 0.0
    %272 = vmatpush1.msra.mxu0 0.0
    %273 = vmatprep.subr.mxu0 0.0
    %274 = vmatpush1.msra.mxu0 0.0
    %275 = vmatprep.subr.mxu0 0.0
    %276 = vmatpush1.msra.mxu0 0.0
    %277 = vmatprep.subr.mxu0 0.0
    %278 = vmatpush1.msra.mxu0 0.0
    %279 = vmatprep.subr.mxu0 0.0
    %280 = vmatpush1.msra.mxu0 0.0
    %281 = vmatprep.subr.mxu0 0.0
    %282 = vmatpush1.msra.mxu0 0.0
    %283 = vmatprep.subr.mxu0 0.0
    %284 = vmatpush1.msra.mxu0 0.0
    %285 = vmatprep.subr.mxu0 0.0
    %286 = vmatpush1.msra.mxu0 0.0
    %287 = vmatprep.subr.mxu0 0.0
    %288 = vmatpush1.msra.mxu0 0.0
    %289 = vmatprep.subr.mxu0 0.0
    %290 = vmatpush1.msra.mxu0 0.0
    %291 = vmatprep.mubr.f32.mxu0 0.0
    %292 = vmatmul.mubr.f32.gmra.mrb[0].mxu0 %v222
    %v293 = vpop.f32.mrb[0].mxu0
    %v294 = vadd.f32 0.0, %v293
    %v295 = vpop.f32.mrb[0].mxu0
    %296 = vmatprep.mubr.f32.mxu0 0.0
    %297 = vmatmul.mubr.f32.gmra.mrb[0].mxu0 %v225
    %v298 = vpop.f32.mrb[0].mxu0
    %v299 = vadd.f32 0.0, %v298
    %v300 = vpop.f32.mrb[0].mxu0
    %301 = vdwg.mxu0
    %v302 = vld [vmem:[#allocation12] sm:$0xff]
    %v303 = vld [vmem:[#allocation12 + $0x8] sm:$0xff]
    %v304 = vld [vmem:[#allocation12 + $0x10] sm:$0xff]
    %v305 = vld [vmem:[#allocation12 + $0x18] sm:$0xff]
    %v307 = vsel %vm135, %v129, 0
    %v310 = vsel %vm135, %v130, 0
    %312 = vmatprep.subr.mxu0 0.0
    %313 = vmatpush1.msra.mxu0 %v302
    %314 = vmatprep.subr.mxu0 0.0
    %315 = vmatpush1.msra.mxu0 %v303
    %316 = vmatprep.subr.mxu0 0.0
    %317 = vmatpush1.msra.mxu0 %v304
    %318 = vmatprep.subr.mxu0 0.0
    %319 = vmatpush1.msra.mxu0 %v305
    %320 = vmatprep.subr.mxu0 0.0
    %321 = vmatpush1.msra.mxu0 0.0
    %322 = vmatprep.subr.mxu0 0.0
    %323 = vmatpush1.msra.mxu0 0.0
    %324 = vmatprep.subr.mxu0 0.0
    %325 = vmatpush1.msra.mxu0 0.0
    %326 = vmatprep.subr.mxu0 0.0
    %327 = vmatpush1.msra.mxu0 0.0
    %328 = vmatprep.subr.mxu0 0.0
    %329 = vmatpush1.msra.mxu0 0.0
    %330 = vmatprep.subr.mxu0 0.0
    %331 = vmatpush1.msra.mxu0 0.0
    %332 = vmatprep.subr.mxu0 0.0
    %333 = vmatpush1.msra.mxu0 0.0
    %334 = vmatprep.subr.mxu0 0.0
    %335 = vmatpush1.msra.mxu0 0.0
    %336 = vmatprep.subr.mxu0 0.0
    %337 = vmatpush1.msra.mxu0 0.0
    %338 = vmatprep.subr.mxu0 0.0
    %339 = vmatpush1.msra.mxu0 0.0
    %340 = vmatprep.subr.mxu0 0.0
    %341 = vmatpush1.msra.mxu0 0.0
    %342 = vmatprep.subr.mxu0 0.0
    %343 = vmatpush1.msra.mxu0 0.0
    %344 = vmatprep.subr.mxu0 0.0
    %345 = vmatpush1.msra.mxu0 0.0
    %346 = vmatprep.subr.mxu0 0.0
    %347 = vmatpush1.msra.mxu0 0.0
    %348 = vmatprep.subr.mxu0 0.0
    %349 = vmatpush1.msra.mxu0 0.0
    %350 = vmatprep.subr.mxu0 0.0
    %351 = vmatpush1.msra.mxu0 0.0
    %352 = vmatprep.subr.mxu0 0.0
    %353 = vmatpush1.msra.mxu0 0.0
    %354 = vmatprep.subr.mxu0 0.0
    %355 = vmatpush1.msra.mxu0 0.0
    %356 = vmatprep.subr.mxu0 0.0
    %357 = vmatpush1.msra.mxu0 0.0
    %358 = vmatprep.subr.mxu0 0.0
    %359 = vmatpush1.msra.mxu0 0.0
    %360 = vmatprep.subr.mxu0 0.0
    %361 = vmatpush1.msra.mxu0 0.0
    %362 = vmatprep.subr.mxu0 0.0
    %363 = vmatpush1.msra.mxu0 0.0
    %364 = vmatprep.subr.mxu0 0.0
    %365 = vmatpush1.msra.mxu0 0.0
    %366 = vmatprep.subr.mxu0 0.0
    %367 = vmatpush1.msra.mxu0 0.0
    %368 = vmatprep.subr.mxu0 0.0
    %369 = vmatpush1.msra.mxu0 0.0
    %370 = vmatprep.subr.mxu0 0.0
    %371 = vmatpush1.msra.mxu0 0.0
    %372 = vmatprep.subr.mxu0 0.0
    %373 = vmatpush1.msra.mxu0 0.0
    %374 = vmatprep.subr.mxu0 0.0
    %375 = vmatpush1.msra.mxu0 0.0
    %376 = vmatprep.mubr.f32.mxu0 0.0
    %377 = vmatmul.mubr.f32.gmra.mrb[0].mxu0 %v307
    %v378 = vpop.f32.mrb[0].mxu0
    %v379 = vadd.f32 0.0, %v378
    %v380 = vpop.f32.mrb[0].mxu0
    %381 = vmatprep.mubr.f32.mxu0 0.0
    %382 = vmatmul.mubr.f32.gmra.mrb[0].mxu0 %v310
    %v383 = vpop.f32.mrb[0].mxu0
    %v384 = vadd.f32 0.0, %v383
    %v385 = vpop.f32.mrb[0].mxu0
    %386 = vdwg.mxu0
    %388 = vrot.lane.b32.xlu0 %v294, 120
    %v389 = vpop.permute.xlu0 %388
    %390 = vrot.lane.b32.xlu0 %v294, 112
    %v391 = vpop.permute.xlu0 %390
    %392 = vrot.lane.b32.xlu0 %v294, 104
    %v393 = vpop.permute.xlu0 %392
    %395 = vrot.lane.b32.xlu0 %v299, 120
    %v396 = vpop.permute.xlu0 %395
    %397 = vrot.lane.b32.xlu0 %v299, 112
    %v398 = vpop.permute.xlu0 %397
    %399 = vrot.lane.b32.xlu0 %v299, 104
    %v400 = vpop.permute.xlu0 %399
    %402 = vrot.lane.b32.xlu0 %v209, 120
    %v403 = vpop.permute.xlu0 %402
    %404 = vrot.lane.b32.xlu0 %v209, 112
    %v405 = vpop.permute.xlu0 %404
    %406 = vrot.lane.b32.xlu0 %v209, 104
    %v407 = vpop.permute.xlu0 %406
    %409 = vrot.lane.b32.xlu0 %v214, 120
    %v410 = vpop.permute.xlu0 %409
    %411 = vrot.lane.b32.xlu0 %v214, 112
    %v412 = vpop.permute.xlu0 %411
    %413 = vrot.lane.b32.xlu0 %v214, 104
    %v414 = vpop.permute.xlu0 %413
    %416 = vrot.lane.b32.xlu0 %v379, 120
    %v417 = vpop.permute.xlu0 %416
    %419 = vrot.lane.b32.xlu0 %v379, 112
    %v420 = vpop.permute.xlu0 %419
    %422 = vrot.lane.b32.xlu0 %v379, 104
    %v423 = vpop.permute.xlu0 %422
    %426 = vrot.lane.b32.xlu0 %v384, 120
    %v427 = vpop.permute.xlu0 %426
    %429 = vrot.lane.b32.xlu0 %v384, 112
    %v430 = vpop.permute.xlu0 %429
    %432 = vrot.lane.b32.xlu0 %v384, 104
    %v433 = vpop.permute.xlu0 %432
    %vm435 = vcmask 64512
    %v436 = vsel %vm435, %v294, 0
    %v438 = vsel %vm435, %v209, 0
    %440 = vmatprep.subr.mxu0 0.0
    %441 = vmatpush1.xpose.msra.mxu0 %v438
    %442 = vmatprep.subr.mxu0 0.0
    %443 = vmatpush1.xpose.msra.mxu0 0.0
    %444 = vmatprep.subr.mxu0 0.0
    %445 = vmatpush1.xpose.msra.mxu0 0.0
    %446 = vmatprep.subr.mxu0 0.0
    %447 = vmatpush1.xpose.msra.mxu0 0.0
    %448 = vmatprep.subr.mxu0 0.0
    %449 = vmatpush1.xpose.msra.mxu0 0.0
    %450 = vmatprep.subr.mxu0 0.0
    %451 = vmatpush1.xpose.msra.mxu0 0.0
    %452 = vmatprep.subr.mxu0 0.0
    %453 = vmatpush1.xpose.msra.mxu0 0.0
    %454 = vmatprep.subr.mxu0 0.0
    %455 = vmatpush1.xpose.msra.mxu0 0.0
    %456 = vmatprep.subr.mxu0 0.0
    %457 = vmatpush1.xpose.msra.mxu0 0.0
    %458 = vmatprep.subr.mxu0 0.0
    %459 = vmatpush1.xpose.msra.mxu0 0.0
    %460 = vmatprep.subr.mxu0 0.0
    %461 = vmatpush1.xpose.msra.mxu0 0.0
    %462 = vmatprep.subr.mxu0 0.0
    %463 = vmatpush1.xpose.msra.mxu0 0.0
    %464 = vmatprep.subr.mxu0 0.0
    %465 = vmatpush1.xpose.msra.mxu0 0.0
    %466 = vmatprep.subr.mxu0 0.0
    %467 = vmatpush1.xpose.msra.mxu0 0.0
    %468 = vmatprep.subr.mxu0 0.0
    %469 = vmatpush1.xpose.msra.mxu0 0.0
    %470 = vmatprep.subr.mxu0 0.0
    %471 = vmatpush1.xpose.msra.mxu0 0.0
    %472 = vmatprep.subr.mxu0 0.0
    %473 = vmatpush1.xpose.msra.mxu0 0.0
    %474 = vmatprep.subr.mxu0 0.0
    %475 = vmatpush1.xpose.msra.mxu0 0.0
    %476 = vmatprep.subr.mxu0 0.0
    %477 = vmatpush1.xpose.msra.mxu0 0.0
    %478 = vmatprep.subr.mxu0 0.0
    %479 = vmatpush1.xpose.msra.mxu0 0.0
    %480 = vmatprep.subr.mxu0 0.0
    %481 = vmatpush1.xpose.msra.mxu0 0.0
    %482 = vmatprep.subr.mxu0 0.0
    %483 = vmatpush1.xpose.msra.mxu0 0.0
    %484 = vmatprep.subr.mxu0 0.0
    %485 = vmatpush1.xpose.msra.mxu0 0.0
    %486 = vmatprep.subr.mxu0 0.0
    %487 = vmatpush1.xpose.msra.mxu0 0.0
    %488 = vmatprep.subr.mxu0 0.0
    %489 = vmatpush1.xpose.msra.mxu0 0.0
    %490 = vmatprep.subr.mxu0 0.0
    %491 = vmatpush1.xpose.msra.mxu0 0.0
    %492 = vmatprep.subr.mxu0 0.0
    %493 = vmatpush1.xpose.msra.mxu0 0.0
    %494 = vmatprep.subr.mxu0 0.0
    %495 = vmatpush1.xpose.msra.mxu0 0.0
    %496 = vmatprep.subr.mxu0 0.0
    %497 = vmatpush1.xpose.msra.mxu0 0.0
    %498 = vmatprep.subr.mxu0 0.0
    %499 = vmatpush1.xpose.msra.mxu0 0.0
    %500 = vmatprep.subr.mxu0 0.0
    %501 = vmatpush1.xpose.msra.mxu0 0.0
    %502 = vmatprep.subr.mxu0 0.0
    %503 = vmatpush1.xpose.msra.mxu0 0.0
    %504 = vmatprep.mubr.f32.mxu0 0.0
    %505 = vmatmul.mubr.f32.gmra.mrb[0].mxu0 %v436
    %v506 = vpop.f32.mrb[0].mxu0
    %v507 = vadd.f32 0.0, %v506
    %v508 = vpop.f32.mrb[0].mxu0
    %509 = vdwg.mxu0
    %v510 = vsel %vm435, %v389, 0
    %v512 = vsel %vm435, %v403, 0
    %514 = vmatprep.subr.mxu0 0.0
    %515 = vmatpush1.xpose.msra.mxu0 %v512
    %516 = vmatprep.subr.mxu0 0.0
    %517 = vmatpush1.xpose.msra.mxu0 0.0
    %518 = vmatprep.subr.mxu0 0.0
    %519 = vmatpush1.xpose.msra.mxu0 0.0
    %520 = vmatprep.subr.mxu0 0.0
    %521 = vmatpush1.xpose.msra.mxu0 0.0
    %522 = vmatprep.subr.mxu0 0.0
    %523 = vmatpush1.xpose.msra.mxu0 0.0
    %524 = vmatprep.subr.mxu0 0.0
    %525 = vmatpush1.xpose.msra.mxu0 0.0
    %526 = vmatprep.subr.mxu0 0.0
    %527 = vmatpush1.xpose.msra.mxu0 0.0
    %528 = vmatprep.subr.mxu0 0.0
    %529 = vmatpush1.xpose.msra.mxu0 0.0
    %530 = vmatprep.subr.mxu0 0.0
    %531 = vmatpush1.xpose.msra.mxu0 0.0
    %532 = vmatprep.subr.mxu0 0.0
    %533 = vmatpush1.xpose.msra.mxu0 0.0
    %534 = vmatprep.subr.mxu0 0.0
    %535 = vmatpush1.xpose.msra.mxu0 0.0
    %536 = vmatprep.subr.mxu0 0.0
    %537 = vmatpush1.xpose.msra.mxu0 0.0
    %538 = vmatprep.subr.mxu0 0.0
    %539 = vmatpush1.xpose.msra.mxu0 0.0
    %540 = vmatprep.subr.mxu0 0.0
    %541 = vmatpush1.xpose.msra.mxu0 0.0
    %542 = vmatprep.subr.mxu0 0.0
    %543 = vmatpush1.xpose.msra.mxu0 0.0
    %544 = vmatprep.subr.mxu0 0.0
    %545 = vmatpush1.xpose.msra.mxu0 0.0
    %546 = vmatprep.subr.mxu0 0.0
    %547 = vmatpush1.xpose.msra.mxu0 0.0
    %548 = vmatprep.subr.mxu0 0.0
    %549 = vmatpush1.xpose.msra.mxu0 0.0
    %550 = vmatprep.subr.mxu0 0.0
    %551 = vmatpush1.xpose.msra.mxu0 0.0
    %552 = vmatprep.subr.mxu0 0.0
    %553 = vmatpush1.xpose.msra.mxu0 0.0
    %554 = vmatprep.subr.mxu0 0.0
    %555 = vmatpush1.xpose.msra.mxu0 0.0
    %556 = vmatprep.subr.mxu0 0.0
    %557 = vmatpush1.xpose.msra.mxu0 0.0
    %558 = vmatprep.subr.mxu0 0.0
    %559 = vmatpush1.xpose.msra.mxu0 0.0
    %560 = vmatprep.subr.mxu0 0.0
    %561 = vmatpush1.xpose.msra.mxu0 0.0
    %562 = vmatprep.subr.mxu0 0.0
    %563 = vmatpush1.xpose.msra.mxu0 0.0
    %564 = vmatprep.subr.mxu0 0.0
    %565 = vmatpush1.xpose.msra.mxu0 0.0
    %566 = vmatprep.subr.mxu0 0.0
    %567 = vmatpush1.xpose.msra.mxu0 0.0
    %568 = vmatprep.subr.mxu0 0.0
    %569 = vmatpush1.xpose.msra.mxu0 0.0
    %570 = vmatprep.subr.mxu0 0.0
    %571 = vmatpush1.xpose.msra.mxu0 0.0
    %572 = vmatprep.subr.mxu0 0.0
    %573 = vmatpush1.xpose.msra.mxu0 0.0
    %574 = vmatprep.subr.mxu0 0.0
    %575 = vmatpush1.xpose.msra.mxu0 0.0
    %576 = vmatprep.subr.mxu0 0.0
    %577 = vmatpush1.xpose.msra.mxu0 0.0
    %578 = vmatprep.mubr.f32.mxu0 0.0
    %579 = vmatmul.mubr.f32.gmra.mrb[0].mxu0 %v510
    %v580 = vpop.f32.mrb[0].mxu0
    %v581 = vadd.f32 0.0, %v580
    %v582 = vpop.f32.mrb[0].mxu0
    %583 = vdwg.mxu0
    %v584 = vsel %vm435, %v391, 0
    %v586 = vsel %vm435, %v405, 0
    %588 = vmatprep.subr.mxu0 0.0
    %589 = vmatpush1.xpose.msra.mxu0 %v586
    %590 = vmatprep.subr.mxu0 0.0
    %591 = vmatpush1.xpose.msra.mxu0 0.0
    %592 = vmatprep.subr.mxu0 0.0
    %593 = vmatpush1.xpose.msra.mxu0 0.0
    %594 = vmatprep.subr.mxu0 0.0
    %595 = vmatpush1.xpose.msra.mxu0 0.0
    %596 = vmatprep.subr.mxu0 0.0
    %597 = vmatpush1.xpose.msra.mxu0 0.0
    %598 = vmatprep.subr.mxu0 0.0
    %599 = vmatpush1.xpose.msra.mxu0 0.0
    %600 = vmatprep.subr.mxu0 0.0
    %601 = vmatpush1.xpose.msra.mxu0 0.0
    %602 = vmatprep.subr.mxu0 0.0
    %603 = vmatpush1.xpose.msra.mxu0 0.0
    %604 = vmatprep.subr.mxu0 0.0
    %605 = vmatpush1.xpose.msra.mxu0 0.0
    %606 = vmatprep.subr.mxu0 0.0
    %607 = vmatpush1.xpose.msra.mxu0 0.0
    %608 = vmatprep.subr.mxu0 0.0
    %609 = vmatpush1.xpose.msra.mxu0 0.0
    %610 = vmatprep.subr.mxu0 0.0
    %611 = vmatpush1.xpose.msra.mxu0 0.0
    %612 = vmatprep.subr.mxu0 0.0
    %613 = vmatpush1.xpose.msra.mxu0 0.0
    %614 = vmatprep.subr.mxu0 0.0
    %615 = vmatpush1.xpose.msra.mxu0 0.0
    %616 = vmatprep.subr.mxu0 0.0
    %617 = vmatpush1.xpose.msra.mxu0 0.0
    %618 = vmatprep.subr.mxu0 0.0
    %619 = vmatpush1.xpose.msra.mxu0 0.0
    %620 = vmatprep.subr.mxu0 0.0
    %621 = vmatpush1.xpose.msra.mxu0 0.0
    %622 = vmatprep.subr.mxu0 0.0
    %623 = vmatpush1.xpose.msra.mxu0 0.0
    %624 = vmatprep.subr.mxu0 0.0
    %625 = vmatpush1.xpose.msra.mxu0 0.0
    %626 = vmatprep.subr.mxu0 0.0
    %627 = vmatpush1.xpose.msra.mxu0 0.0
    %628 = vmatprep.subr.mxu0 0.0
    %629 = vmatpush1.xpose.msra.mxu0 0.0
    %630 = vmatprep.subr.mxu0 0.0
    %631 = vmatpush1.xpose.msra.mxu0 0.0
    %632 = vmatprep.subr.mxu0 0.0
    %633 = vmatpush1.xpose.msra.mxu0 0.0
    %634 = vmatprep.subr.mxu0 0.0
    %635 = vmatpush1.xpose.msra.mxu0 0.0
    %636 = vmatprep.subr.mxu0 0.0
    %637 = vmatpush1.xpose.msra.mxu0 0.0
    %638 = vmatprep.subr.mxu0 0.0
    %639 = vmatpush1.xpose.msra.mxu0 0.0
    %640 = vmatprep.subr.mxu0 0.0
    %641 = vmatpush1.xpose.msra.mxu0 0.0
    %642 = vmatprep.subr.mxu0 0.0
    %643 = vmatpush1.xpose.msra.mxu0 0.0
    %644 = vmatprep.subr.mxu0 0.0
    %645 = vmatpush1.xpose.msra.mxu0 0.0
    %646 = vmatprep.subr.mxu0 0.0
    %647 = vmatpush1.xpose.msra.mxu0 0.0
    %648 = vmatprep.subr.mxu0 0.0
    %649 = vmatpush1.xpose.msra.mxu0 0.0
    %650 = vmatprep.subr.mxu0 0.0
    %651 = vmatpush1.xpose.msra.mxu0 0.0
    %652 = vmatprep.mubr.f32.mxu0 0.0
    %653 = vmatmul.mubr.f32.gmra.mrb[0].mxu0 %v584
    %v654 = vpop.f32.mrb[0].mxu0
    %v655 = vadd.f32 0.0, %v654
    %v656 = vpop.f32.mrb[0].mxu0
    %657 = vdwg.mxu0
    %v658 = vsel %vm435, %v393, 0
    %v660 = vsel %vm435, %v407, 0
    %662 = vmatprep.subr.mxu0 0.0
    %663 = vmatpush1.xpose.msra.mxu0 %v660
    %664 = vmatprep.subr.mxu0 0.0
    %665 = vmatpush1.xpose.msra.mxu0 0.0
    %666 = vmatprep.subr.mxu0 0.0
    %667 = vmatpush1.xpose.msra.mxu0 0.0
    %668 = vmatprep.subr.mxu0 0.0
    %669 = vmatpush1.xpose.msra.mxu0 0.0
    %670 = vmatprep.subr.mxu0 0.0
    %671 = vmatpush1.xpose.msra.mxu0 0.0
    %672 = vmatprep.subr.mxu0 0.0
    %673 = vmatpush1.xpose.msra.mxu0 0.0
    %674 = vmatprep.subr.mxu0 0.0
    %675 = vmatpush1.xpose.msra.mxu0 0.0
    %676 = vmatprep.subr.mxu0 0.0
    %677 = vmatpush1.xpose.msra.mxu0 0.0
    %678 = vmatprep.subr.mxu0 0.0
    %679 = vmatpush1.xpose.msra.mxu0 0.0
    %680 = vmatprep.subr.mxu0 0.0
    %681 = vmatpush1.xpose.msra.mxu0 0.0
    %682 = vmatprep.subr.mxu0 0.0
    %683 = vmatpush1.xpose.msra.mxu0 0.0
    %684 = vmatprep.subr.mxu0 0.0
    %685 = vmatpush1.xpose.msra.mxu0 0.0
    %686 = vmatprep.subr.mxu0 0.0
    %687 = vmatpush1.xpose.msra.mxu0 0.0
    %688 = vmatprep.subr.mxu0 0.0
    %689 = vmatpush1.xpose.msra.mxu0 0.0
    %690 = vmatprep.subr.mxu0 0.0
    %691 = vmatpush1.xpose.msra.mxu0 0.0
    %692 = vmatprep.subr.mxu0 0.0
    %693 = vmatpush1.xpose.msra.mxu0 0.0
    %694 = vmatprep.subr.mxu0 0.0
    %695 = vmatpush1.xpose.msra.mxu0 0.0
    %696 = vmatprep.subr.mxu0 0.0
    %697 = vmatpush1.xpose.msra.mxu0 0.0
    %698 = vmatprep.subr.mxu0 0.0
    %699 = vmatpush1.xpose.msra.mxu0 0.0
    %700 = vmatprep.subr.mxu0 0.0
    %701 = vmatpush1.xpose.msra.mxu0 0.0
    %702 = vmatprep.subr.mxu0 0.0
    %703 = vmatpush1.xpose.msra.mxu0 0.0
    %704 = vmatprep.subr.mxu0 0.0
    %705 = vmatpush1.xpose.msra.mxu0 0.0
    %706 = vmatprep.subr.mxu0 0.0
    %707 = vmatpush1.xpose.msra.mxu0 0.0
    %708 = vmatprep.subr.mxu0 0.0
    %709 = vmatpush1.xpose.msra.mxu0 0.0
    %710 = vmatprep.subr.mxu0 0.0
    %711 = vmatpush1.xpose.msra.mxu0 0.0
    %712 = vmatprep.subr.mxu0 0.0
    %713 = vmatpush1.xpose.msra.mxu0 0.0
    %714 = vmatprep.subr.mxu0 0.0
    %715 = vmatpush1.xpose.msra.mxu0 0.0
    %716 = vmatprep.subr.mxu0 0.0
    %717 = vmatpush1.xpose.msra.mxu0 0.0
    %718 = vmatprep.subr.mxu0 0.0
    %719 = vmatpush1.xpose.msra.mxu0 0.0
    %720 = vmatprep.subr.mxu0 0.0
    %721 = vmatpush1.xpose.msra.mxu0 0.0
    %722 = vmatprep.subr.mxu0 0.0
    %723 = vmatpush1.xpose.msra.mxu0 0.0
    %724 = vmatprep.subr.mxu0 0.0
    %725 = vmatpush1.xpose.msra.mxu0 0.0
    %726 = vmatprep.mubr.f32.mxu0 0.0
    %727 = vmatmul.mubr.f32.gmra.mrb[0].mxu0 %v658
    %v728 = vpop.f32.mrb[0].mxu0
    %v729 = vadd.f32 0.0, %v728
    %v730 = vpop.f32.mrb[0].mxu0
    %731 = vdwg.mxu0
    %v732 = vsel %vm435, %v299, 0
    %v734 = vsel %vm435, %v214, 0
    %736 = vmatprep.subr.mxu0 0.0
    %737 = vmatpush1.xpose.msra.mxu0 %v734
    %738 = vmatprep.subr.mxu0 0.0
    %739 = vmatpush1.xpose.msra.mxu0 0.0
    %740 = vmatprep.subr.mxu0 0.0
    %741 = vmatpush1.xpose.msra.mxu0 0.0
    %742 = vmatprep.subr.mxu0 0.0
    %743 = vmatpush1.xpose.msra.mxu0 0.0
    %744 = vmatprep.subr.mxu0 0.0
    %745 = vmatpush1.xpose.msra.mxu0 0.0
    %746 = vmatprep.subr.mxu0 0.0
    %747 = vmatpush1.xpose.msra.mxu0 0.0
    %748 = vmatprep.subr.mxu0 0.0
    %749 = vmatpush1.xpose.msra.mxu0 0.0
    %750 = vmatprep.subr.mxu0 0.0
    %751 = vmatpush1.xpose.msra.mxu0 0.0
    %752 = vmatprep.subr.mxu0 0.0
    %753 = vmatpush1.xpose.msra.mxu0 0.0
    %754 = vmatprep.subr.mxu0 0.0
    %755 = vmatpush1.xpose.msra.mxu0 0.0
    %756 = vmatprep.subr.mxu0 0.0
    %757 = vmatpush1.xpose.msra.mxu0 0.0
    %758 = vmatprep.subr.mxu0 0.0
    %759 = vmatpush1.xpose.msra.mxu0 0.0
    %760 = vmatprep.subr.mxu0 0.0
    %761 = vmatpush1.xpose.msra.mxu0 0.0
    %762 = vmatprep.subr.mxu0 0.0
    %763 = vmatpush1.xpose.msra.mxu0 0.0
    %764 = vmatprep.subr.mxu0 0.0
    %765 = vmatpush1.xpose.msra.mxu0 0.0
    %766 = vmatprep.subr.mxu0 0.0
    %767 = vmatpush1.xpose.msra.mxu0 0.0
    %768 = vmatprep.subr.mxu0 0.0
    %769 = vmatpush1.xpose.msra.mxu0 0.0
    %770 = vmatprep.subr.mxu0 0.0
    %771 = vmatpush1.xpose.msra.mxu0 0.0
    %772 = vmatprep.subr.mxu0 0.0
    %773 = vmatpush1.xpose.msra.mxu0 0.0
    %774 = vmatprep.subr.mxu0 0.0
    %775 = vmatpush1.xpose.msra.mxu0 0.0
    %776 = vmatprep.subr.mxu0 0.0
    %777 = vmatpush1.xpose.msra.mxu0 0.0
    %778 = vmatprep.subr.mxu0 0.0
    %779 = vmatpush1.xpose.msra.mxu0 0.0
    %780 = vmatprep.subr.mxu0 0.0
    %781 = vmatpush1.xpose.msra.mxu0 0.0
    %782 = vmatprep.subr.mxu0 0.0
    %783 = vmatpush1.xpose.msra.mxu0 0.0
    %784 = vmatprep.subr.mxu0 0.0
    %785 = vmatpush1.xpose.msra.mxu0 0.0
    %786 = vmatprep.subr.mxu0 0.0
    %787 = vmatpush1.xpose.msra.mxu0 0.0
    %788 = vmatprep.subr.mxu0 0.0
    %789 = vmatpush1.xpose.msra.mxu0 0.0
    %790 = vmatprep.subr.mxu0 0.0
    %791 = vmatpush1.xpose.msra.mxu0 0.0
    %792 = vmatprep.subr.mxu0 0.0
    %793 = vmatpush1.xpose.msra.mxu0 0.0
    %794 = vmatprep.subr.mxu0 0.0
    %795 = vmatpush1.xpose.msra.mxu0 0.0
    %796 = vmatprep.subr.mxu0 0.0
    %797 = vmatpush1.xpose.msra.mxu0 0.0
    %798 = vmatprep.subr.mxu0 0.0
    %799 = vmatpush1.xpose.msra.mxu0 0.0
    %800 = vmatprep.mubr.f32.mxu0 0.0
    %801 = vmatmul.mubr.f32.gmra.mrb[0].mxu0 %v732
    %v802 = vpop.f32.mrb[0].mxu0
    %v803 = vadd.f32 0.0, %v802
    %v804 = vpop.f32.mrb[0].mxu0
    %805 = vdwg.mxu0
    %v806 = vsel %vm435, %v396, 0
    %v808 = vsel %vm435, %v410, 0
    %810 = vmatprep.subr.mxu0 0.0
    %811 = vmatpush1.xpose.msra.mxu0 %v808
    %812 = vmatprep.subr.mxu0 0.0
    %813 = vmatpush1.xpose.msra.mxu0 0.0
    %814 = vmatprep.subr.mxu0 0.0
    %815 = vmatpush1.xpose.msra.mxu0 0.0
    %816 = vmatprep.subr.mxu0 0.0
    %817 = vmatpush1.xpose.msra.mxu0 0.0
    %818 = vmatprep.subr.mxu0 0.0
    %819 = vmatpush1.xpose.msra.mxu0 0.0
    %820 = vmatprep.subr.mxu0 0.0
    %821 = vmatpush1.xpose.msra.mxu0 0.0
    %822 = vmatprep.subr.mxu0 0.0
    %823 = vmatpush1.xpose.msra.mxu0 0.0
    %824 = vmatprep.subr.mxu0 0.0
    %825 = vmatpush1.xpose.msra.mxu0 0.0
    %826 = vmatprep.subr.mxu0 0.0
    %827 = vmatpush1.xpose.msra.mxu0 0.0
    %828 = vmatprep.subr.mxu0 0.0
    %829 = vmatpush1.xpose.msra.mxu0 0.0
    %830 = vmatprep.subr.mxu0 0.0
    %831 = vmatpush1.xpose.msra.mxu0 0.0
    %832 = vmatprep.subr.mxu0 0.0
    %833 = vmatpush1.xpose.msra.mxu0 0.0
    %834 = vmatprep.subr.mxu0 0.0
    %835 = vmatpush1.xpose.msra.mxu0 0.0
    %836 = vmatprep.subr.mxu0 0.0
    %837 = vmatpush1.xpose.msra.mxu0 0.0
    %838 = vmatprep.subr.mxu0 0.0
    %839 = vmatpush1.xpose.msra.mxu0 0.0
    %840 = vmatprep.subr.mxu0 0.0
    %841 = vmatpush1.xpose.msra.mxu0 0.0
    %842 = vmatprep.subr.mxu0 0.0
    %843 = vmatpush1.xpose.msra.mxu0 0.0
    %844 = vmatprep.subr.mxu0 0.0
    %845 = vmatpush1.xpose.msra.mxu0 0.0
    %846 = vmatprep.subr.mxu0 0.0
    %847 = vmatpush1.xpose.msra.mxu0 0.0
    %848 = vmatprep.subr.mxu0 0.0
    %849 = vmatpush1.xpose.msra.mxu0 0.0
    %850 = vmatprep.subr.mxu0 0.0
    %851 = vmatpush1.xpose.msra.mxu0 0.0
    %852 = vmatprep.subr.mxu0 0.0
    %853 = vmatpush1.xpose.msra.mxu0 0.0
    %854 = vmatprep.subr.mxu0 0.0
    %855 = vmatpush1.xpose.msra.mxu0 0.0
    %856 = vmatprep.subr.mxu0 0.0
    %857 = vmatpush1.xpose.msra.mxu0 0.0
    %858 = vmatprep.subr.mxu0 0.0
    %859 = vmatpush1.xpose.msra.mxu0 0.0
    %860 = vmatprep.subr.mxu0 0.0
    %861 = vmatpush1.xpose.msra.mxu0 0.0
    %862 = vmatprep.subr.mxu0 0.0
    %863 = vmatpush1.xpose.msra.mxu0 0.0
    %864 = vmatprep.subr.mxu0 0.0
    %865 = vmatpush1.xpose.msra.mxu0 0.0
    %866 = vmatprep.subr.mxu0 0.0
    %867 = vmatpush1.xpose.msra.mxu0 0.0
    %868 = vmatprep.subr.mxu0 0.0
    %869 = vmatpush1.xpose.msra.mxu0 0.0
    %870 = vmatprep.subr.mxu0 0.0
    %871 = vmatpush1.xpose.msra.mxu0 0.0
    %872 = vmatprep.subr.mxu0 0.0
    %873 = vmatpush1.xpose.msra.mxu0 0.0
    %874 = vmatprep.mubr.f32.mxu0 0.0
    %875 = vmatmul.mubr.f32.gmra.mrb[0].mxu0 %v806
    %v876 = vpop.f32.mrb[0].mxu0
    %v877 = vadd.f32 0.0, %v876
    %v878 = vpop.f32.mrb[0].mxu0
    %879 = vdwg.mxu0
    %v880 = vsel %vm435, %v398, 0
    %v882 = vsel %vm435, %v412, 0
    %884 = vmatprep.subr.mxu0 0.0
    %885 = vmatpush1.xpose.msra.mxu0 %v882
    %886 = vmatprep.subr.mxu0 0.0
    %887 = vmatpush1.xpose.msra.mxu0 0.0
    %888 = vmatprep.subr.mxu0 0.0
    %889 = vmatpush1.xpose.msra.mxu0 0.0
    %890 = vmatprep.subr.mxu0 0.0
    %891 = vmatpush1.xpose.msra.mxu0 0.0
    %892 = vmatprep.subr.mxu0 0.0
    %893 = vmatpush1.xpose.msra.mxu0 0.0
    %894 = vmatprep.subr.mxu0 0.0
    %895 = vmatpush1.xpose.msra.mxu0 0.0
    %896 = vmatprep.subr.mxu0 0.0
    %897 = vmatpush1.xpose.msra.mxu0 0.0
    %898 = vmatprep.subr.mxu0 0.0
    %899 = vmatpush1.xpose.msra.mxu0 0.0
    %900 = vmatprep.subr.mxu0 0.0
    %901 = vmatpush1.xpose.msra.mxu0 0.0
    %902 = vmatprep.subr.mxu0 0.0
    %903 = vmatpush1.xpose.msra.mxu0 0.0
    %904 = vmatprep.subr.mxu0 0.0
    %905 = vmatpush1.xpose.msra.mxu0 0.0
    %906 = vmatprep.subr.mxu0 0.0
    %907 = vmatpush1.xpose.msra.mxu0 0.0
    %908 = vmatprep.subr.mxu0 0.0
    %909 = vmatpush1.xpose.msra.mxu0 0.0
    %910 = vmatprep.subr.mxu0 0.0
    %911 = vmatpush1.xpose.msra.mxu0 0.0
    %912 = vmatprep.subr.mxu0 0.0
    %913 = vmatpush1.xpose.msra.mxu0 0.0
    %914 = vmatprep.subr.mxu0 0.0
    %915 = vmatpush1.xpose.msra.mxu0 0.0
    %916 = vmatprep.subr.mxu0 0.0
    %917 = vmatpush1.xpose.msra.mxu0 0.0
    %918 = vmatprep.subr.mxu0 0.0
    %919 = vmatpush1.xpose.msra.mxu0 0.0
    %920 = vmatprep.subr.mxu0 0.0
    %921 = vmatpush1.xpose.msra.mxu0 0.0
    %922 = vmatprep.subr.mxu0 0.0
    %923 = vmatpush1.xpose.msra.mxu0 0.0
    %924 = vmatprep.subr.mxu0 0.0
    %925 = vmatpush1.xpose.msra.mxu0 0.0
    %926 = vmatprep.subr.mxu0 0.0
    %927 = vmatpush1.xpose.msra.mxu0 0.0
    %928 = vmatprep.subr.mxu0 0.0
    %929 = vmatpush1.xpose.msra.mxu0 0.0
    %930 = vmatprep.subr.mxu0 0.0
    %931 = vmatpush1.xpose.msra.mxu0 0.0
    %932 = vmatprep.subr.mxu0 0.0
    %933 = vmatpush1.xpose.msra.mxu0 0.0
    %934 = vmatprep.subr.mxu0 0.0
    %935 = vmatpush1.xpose.msra.mxu0 0.0
    %936 = vmatprep.subr.mxu0 0.0
    %937 = vmatpush1.xpose.msra.mxu0 0.0
    %938 = vmatprep.subr.mxu0 0.0
    %939 = vmatpush1.xpose.msra.mxu0 0.0
    %940 = vmatprep.subr.mxu0 0.0
    %941 = vmatpush1.xpose.msra.mxu0 0.0
    %942 = vmatprep.subr.mxu0 0.0
    %943 = vmatpush1.xpose.msra.mxu0 0.0
    %944 = vmatprep.subr.mxu0 0.0
    %945 = vmatpush1.xpose.msra.mxu0 0.0
    %946 = vmatprep.subr.mxu0 0.0
    %947 = vmatpush1.xpose.msra.mxu0 0.0
    %948 = vmatprep.mubr.f32.mxu0 0.0
    %949 = vmatmul.mubr.f32.gmra.mrb[0].mxu0 %v880
    %v950 = vpop.f32.mrb[0].mxu0
    %v951 = vadd.f32 0.0, %v950
    %v952 = vpop.f32.mrb[0].mxu0
    %953 = vdwg.mxu0
    %v954 = vsel %vm435, %v400, 0
    %v956 = vsel %vm435, %v414, 0
    %958 = vmatprep.subr.mxu0 0.0
    %959 = vmatpush1.xpose.msra.mxu0 %v956
    %960 = vmatprep.subr.mxu0 0.0
    %961 = vmatpush1.xpose.msra.mxu0 0.0
    %962 = vmatprep.subr.mxu0 0.0
    %963 = vmatpush1.xpose.msra.mxu0 0.0
    %964 = vmatprep.subr.mxu0 0.0
    %965 = vmatpush1.xpose.msra.mxu0 0.0
    %966 = vmatprep.subr.mxu0 0.0
    %967 = vmatpush1.xpose.msra.mxu0 0.0
    %968 = vmatprep.subr.mxu0 0.0
    %969 = vmatpush1.xpose.msra.mxu0 0.0
    %970 = vmatprep.subr.mxu0 0.0
    %971 = vmatpush1.xpose.msra.mxu0 0.0
    %972 = vmatprep.subr.mxu0 0.0
    %973 = vmatpush1.xpose.msra.mxu0 0.0
    %974 = vmatprep.subr.mxu0 0.0
    %975 = vmatpush1.xpose.msra.mxu0 0.0
    %976 = vmatprep.subr.mxu0 0.0
    %977 = vmatpush1.xpose.msra.mxu0 0.0
    %978 = vmatprep.subr.mxu0 0.0
    %979 = vmatpush1.xpose.msra.mxu0 0.0
    %980 = vmatprep.subr.mxu0 0.0
    %981 = vmatpush1.xpose.msra.mxu0 0.0
    %982 = vmatprep.subr.mxu0 0.0
    %983 = vmatpush1.xpose.msra.mxu0 0.0
    %984 = vmatprep.subr.mxu0 0.0
    %985 = vmatpush1.xpose.msra.mxu0 0.0
    %986 = vmatprep.subr.mxu0 0.0
    %987 = vmatpush1.xpose.msra.mxu0 0.0
    %988 = vmatprep.subr.mxu0 0.0
    %989 = vmatpush1.xpose.msra.mxu0 0.0
    %990 = vmatprep.subr.mxu0 0.0
    %991 = vmatpush1.xpose.msra.mxu0 0.0
    %992 = vmatprep.subr.mxu0 0.0
    %993 = vmatpush1.xpose.msra.mxu0 0.0
    %994 = vmatprep.subr.mxu0 0.0
    %995 = vmatpush1.xpose.msra.mxu0 0.0
    %996 = vmatprep.subr.mxu0 0.0
    %997 = vmatpush1.xpose.msra.mxu0 0.0
    %998 = vmatprep.subr.mxu0 0.0
    %999 = vmatpush1.xpose.msra.mxu0 0.0
    %1000 = vmatprep.subr.mxu0 0.0
    %1001 = vmatpush1.xpose.msra.mxu0 0.0
    %1002 = vmatprep.subr.mxu0 0.0
    %1003 = vmatpush1.xpose.msra.mxu0 0.0
    %1004 = vmatprep.subr.mxu0 0.0
    %1005 = vmatpush1.xpose.msra.mxu0 0.0
    %1006 = vmatprep.subr.mxu0 0.0
    %1007 = vmatpush1.xpose.msra.mxu0 0.0
    %1008 = vmatprep.subr.mxu0 0.0
    %1009 = vmatpush1.xpose.msra.mxu0 0.0
    %1010 = vmatprep.subr.mxu0 0.0
    %1011 = vmatpush1.xpose.msra.mxu0 0.0
    %1012 = vmatprep.subr.mxu0 0.0
    %1013 = vmatpush1.xpose.msra.mxu0 0.0
    %1014 = vmatprep.subr.mxu0 0.0
    %1015 = vmatpush1.xpose.msra.mxu0 0.0
    %1016 = vmatprep.subr.mxu0 0.0
    %1017 = vmatpush1.xpose.msra.mxu0 0.0
    %1018 = vmatprep.subr.mxu0 0.0
    %1019 = vmatpush1.xpose.msra.mxu0 0.0
    %1020 = vmatprep.subr.mxu0 0.0
    %1021 = vmatpush1.xpose.msra.mxu0 0.0
    %1022 = vmatprep.mubr.f32.mxu0 0.0
    %1023 = vmatmul.mubr.f32.gmra.mrb[0].mxu0 %v954
    %v1024 = vpop.f32.mrb[0].mxu0
    %v1025 = vadd.f32 0.0, %v1024
    %v1026 = vpop.f32.mrb[0].mxu0
    %1027 = vdwg.mxu0
    %v1028 = vsel %vm435, %v507, -inf
    %1029 = vmax.xlane.f32.xlu0 %v1028
    %v1030 = vpop.xlane.xlu0 %1029
    %v1031 = vsel %vm435, %v581, -inf
    %1032 = vmax.xlane.f32.xlu0 %v1031
    %v1033 = vpop.xlane.xlu0 %1032
    %v1034 = vsel %vm435, %v655, -inf
    %1035 = vmax.xlane.f32.xlu0 %v1034
    %v1036 = vpop.xlane.xlu0 %1035
    %v1037 = vsel %vm435, %v729, -inf
    %1038 = vmax.xlane.f32.xlu0 %v1037
    %v1039 = vpop.xlane.xlu0 %1038
    %v1040 = vsel %vm435, %v803, -inf
    %1041 = vmax.xlane.f32.xlu0 %v1040
    %v1042 = vpop.xlane.xlu0 %1041
    %v1043 = vsel %vm435, %v877, -inf
    %1044 = vmax.xlane.f32.xlu0 %v1043
    %v1045 = vpop.xlane.xlu0 %1044
    %v1046 = vsel %vm435, %v951, -inf
    %1047 = vmax.xlane.f32.xlu0 %v1046
    %v1048 = vpop.xlane.xlu0 %1047
    %v1049 = vsel %vm435, %v1025, -inf
    %1050 = vmax.xlane.f32.xlu0 %v1049
    %v1051 = vpop.xlane.xlu0 %1050
    %v1052 = vsub.f32 %v507, %v1030
    %v1053 = vsub.f32 %v581, %v1033
    %v1054 = vsub.f32 %v655, %v1036
    %v1055 = vsub.f32 %v729, %v1039
    %v1056 = vsub.f32 %v803, %v1042
    %v1057 = vsub.f32 %v877, %v1045
    %v1058 = vsub.f32 %v951, %v1048
    %v1059 = vsub.f32 %v1025, %v1051
    %v1060 = vmul.f32 %v1052, 1.442695
    %v1061 = vpow.pop %v1060
    %v1062 = vmul.f32 %v1053, 1.442695
    %v1063 = vpow.pop %v1062
    %v1064 = vmul.f32 %v1054, 1.442695
    %v1065 = vpow.pop %v1064
    %v1066 = vmul.f32 %v1055, 1.442695
    %v1067 = vpow.pop %v1066
    %v1068 = vmul.f32 %v1056, 1.442695
    %v1069 = vpow.pop %v1068
    %v1070 = vmul.f32 %v1057, 1.442695
    %v1071 = vpow.pop %v1070
    %v1072 = vmul.f32 %v1058, 1.442695
    %v1073 = vpow.pop %v1072
    %v1074 = vmul.f32 %v1059, 1.442695
    %v1075 = vpow.pop %v1074
    %v1076 = vsel %vm435, %v1061, 0.0
    %1077 = vadd.xlane.f32.xlu0 %v1076
    %v1078 = vpop.xlane.xlu0 %1077
    %v1079 = vsel %vm435, %v1063, 0.0
    %1080 = vadd.xlane.f32.xlu0 %v1079
    %v1081 = vpop.xlane.xlu0 %1080
    %v1082 = vsel %vm435, %v1065, 0.0
    %1083 = vadd.xlane.f32.xlu0 %v1082
    %v1084 = vpop.xlane.xlu0 %1083
    %v1085 = vsel %vm435, %v1067, 0.0
    %1086 = vadd.xlane.f32.xlu0 %v1085
    %v1087 = vpop.xlane.xlu0 %1086
    %v1088 = vsel %vm435, %v1069, 0.0
    %1089 = vadd.xlane.f32.xlu0 %v1088
    %v1090 = vpop.xlane.xlu0 %1089
    %v1091 = vsel %vm435, %v1071, 0.0
    %1092 = vadd.xlane.f32.xlu0 %v1091
    %v1093 = vpop.xlane.xlu0 %1092
    %v1094 = vsel %vm435, %v1073, 0.0
    %1095 = vadd.xlane.f32.xlu0 %v1094
    %v1096 = vpop.xlane.xlu0 %1095
    %v1097 = vsel %vm435, %v1075, 0.0
    %1098 = vadd.xlane.f32.xlu0 %v1097
    %v1099 = vpop.xlane.xlu0 %1098
    %v1100 = vrcp.pop %v1078
    %v1101 = vrcp.pop %v1081
    %v1102 = vrcp.pop %v1084
    %v1103 = vrcp.pop %v1087
    %v1104 = vrcp.pop %v1090
    %v1105 = vrcp.pop %v1093
    %v1106 = vrcp.pop %v1096
    %v1107 = vrcp.pop %v1099
    %v1108 = vmul.f32 %v1061, %v1100
    %v1109 = vmul.f32 %v1063, %v1101
    %v1110 = vmul.f32 %v1065, %v1102
    %v1111 = vmul.f32 %v1067, %v1103
    %v1112 = vmul.f32 %v1069, %v1104
    %v1113 = vmul.f32 %v1071, %v1105
    %v1114 = vmul.f32 %v1073, %v1106
    %v1115 = vmul.f32 %v1075, %v1107
    %v1117 = vsel %vm435, %v1108, 0
    %1119 = vmatprep.subr.mxu0 0.0
    %1120 = vmatpush1.msra.mxu0 %v379
    %1121 = vmatprep.subr.mxu0 0.0
    %1122 = vmatpush1.msra.mxu0 0.0
    %1123 = vmatprep.subr.mxu0 0.0
    %1124 = vmatpush1.msra.mxu0 0.0
    %1125 = vmatprep.subr.mxu0 0.0
    %1126 = vmatpush1.msra.mxu0 0.0
    %1127 = vmatprep.subr.mxu0 0.0
    %1128 = vmatpush1.msra.mxu0 0.0
    %1129 = vmatprep.subr.mxu0 0.0
    %1130 = vmatpush1.msra.mxu0 0.0
    %1131 = vmatprep.subr.mxu0 0.0
    %1132 = vmatpush1.msra.mxu0 0.0
    %1133 = vmatprep.subr.mxu0 0.0
    %1134 = vmatpush1.msra.mxu0 0.0
    %1135 = vmatprep.subr.mxu0 0.0
    %1136 = vmatpush1.msra.mxu0 0.0
    %1137 = vmatprep.subr.mxu0 0.0
    %1138 = vmatpush1.msra.mxu0 0.0
    %1139 = vmatprep.subr.mxu0 0.0
    %1140 = vmatpush1.msra.mxu0 0.0
    %1141 = vmatprep.subr.mxu0 0.0
    %1142 = vmatpush1.msra.mxu0 0.0
    %1143 = vmatprep.subr.mxu0 0.0
    %1144 = vmatpush1.msra.mxu0 0.0
    %1145 = vmatprep.subr.mxu0 0.0
    %1146 = vmatpush1.msra.mxu0 0.0
    %1147 = vmatprep.subr.mxu0 0.0
    %1148 = vmatpush1.msra.mxu0 0.0
    %1149 = vmatprep.subr.mxu0 0.0
    %1150 = vmatpush1.msra.mxu0 0.0
    %1151 = vmatprep.subr.mxu0 0.0
    %1152 = vmatpush1.msra.mxu0 0.0
    %1153 = vmatprep.subr.mxu0 0.0
    %1154 = vmatpush1.msra.mxu0 0.0
    %1155 = vmatprep.subr.mxu0 0.0
    %1156 = vmatpush1.msra.mxu0 0.0
    %1157 = vmatprep.subr.mxu0 0.0
    %1158 = vmatpush1.msra.mxu0 0.0
    %1159 = vmatprep.subr.mxu0 0.0
    %1160 = vmatpush1.msra.mxu0 0.0
    %1161 = vmatprep.subr.mxu0 0.0
    %1162 = vmatpush1.msra.mxu0 0.0
    %1163 = vmatprep.subr.mxu0 0.0
    %1164 = vmatpush1.msra.mxu0 0.0
    %1165 = vmatprep.subr.mxu0 0.0
    %1166 = vmatpush1.msra.mxu0 0.0
    %1167 = vmatprep.subr.mxu0 0.0
    %1168 = vmatpush1.msra.mxu0 0.0
    %1169 = vmatprep.subr.mxu0 0.0
    %1170 = vmatpush1.msra.mxu0 0.0
    %1171 = vmatprep.subr.mxu0 0.0
    %1172 = vmatpush1.msra.mxu0 0.0
    %1173 = vmatprep.subr.mxu0 0.0
    %1174 = vmatpush1.msra.mxu0 0.0
    %1175 = vmatprep.subr.mxu0 0.0
    %1176 = vmatpush1.msra.mxu0 0.0
    %1177 = vmatprep.subr.mxu0 0.0
    %1178 = vmatpush1.msra.mxu0 0.0
    %1179 = vmatprep.subr.mxu0 0.0
    %1180 = vmatpush1.msra.mxu0 0.0
    %1181 = vmatprep.subr.mxu0 0.0
    %1182 = vmatpush1.msra.mxu0 0.0
    %1183 = vmatprep.mubr.f32.mxu0 0.0
    %1184 = vmatmul.mubr.f32.gmra.mrb[0].mxu0 %v1117
    %v1185 = vpop.f32.mrb[0].mxu0
    %v1186 = vadd.f32 0.0, %v1185
    %v1187 = vpop.f32.mrb[0].mxu0
    %1188 = vdwg.mxu0
    %v1190 = vsel %vm435, %v1109, 0
    %1192 = vmatprep.subr.mxu0 0.0
    %1193 = vmatpush1.msra.mxu0 %v417
    %1194 = vmatprep.subr.mxu0 0.0
    %1195 = vmatpush1.msra.mxu0 0.0
    %1196 = vmatprep.subr.mxu0 0.0
    %1197 = vmatpush1.msra.mxu0 0.0
    %1198 = vmatprep.subr.mxu0 0.0
    %1199 = vmatpush1.msra.mxu0 0.0
    %1200 = vmatprep.subr.mxu0 0.0
    %1201 = vmatpush1.msra.mxu0 0.0
    %1202 = vmatprep.subr.mxu0 0.0
    %1203 = vmatpush1.msra.mxu0 0.0
    %1204 = vmatprep.subr.mxu0 0.0
    %1205 = vmatpush1.msra.mxu0 0.0
    %1206 = vmatprep.subr.mxu0 0.0
    %1207 = vmatpush1.msra.mxu0 0.0
    %1208 = vmatprep.subr.mxu0 0.0
    %1209 = vmatpush1.msra.mxu0 0.0
    %1210 = vmatprep.subr.mxu0 0.0
    %1211 = vmatpush1.msra.mxu0 0.0
    %1212 = vmatprep.subr.mxu0 0.0
    %1213 = vmatpush1.msra.mxu0 0.0
    %1214 = vmatprep.subr.mxu0 0.0
    %1215 = vmatpush1.msra.mxu0 0.0
    %1216 = vmatprep.subr.mxu0 0.0
    %1217 = vmatpush1.msra.mxu0 0.0
    %1218 = vmatprep.subr.mxu0 0.0
    %1219 = vmatpush1.msra.mxu0 0.0
    %1220 = vmatprep.subr.mxu0 0.0
    %1221 = vmatpush1.msra.mxu0 0.0
    %1222 = vmatprep.subr.mxu0 0.0
    %1223 = vmatpush1.msra.mxu0 0.0
    %1224 = vmatprep.subr.mxu0 0.0
    %1225 = vmatpush1.msra.mxu0 0.0
    %1226 = vmatprep.subr.mxu0 0.0
    %1227 = vmatpush1.msra.mxu0 0.0
    %1228 = vmatprep.subr.mxu0 0.0
    %1229 = vmatpush1.msra.mxu0 0.0
    %1230 = vmatprep.subr.mxu0 0.0
    %1231 = vmatpush1.msra.mxu0 0.0
    %1232 = vmatprep.subr.mxu0 0.0
    %1233 = vmatpush1.msra.mxu0 0.0
    %1234 = vmatprep.subr.mxu0 0.0
    %1235 = vmatpush1.msra.mxu0 0.0
    %1236 = vmatprep.subr.mxu0 0.0
    %1237 = vmatpush1.msra.mxu0 0.0
    %1238 = vmatprep.subr.mxu0 0.0
    %1239 = vmatpush1.msra.mxu0 0.0
    %1240 = vmatprep.subr.mxu0 0.0
    %1241 = vmatpush1.msra.mxu0 0.0
    %1242 = vmatprep.subr.mxu0 0.0
    %1243 = vmatpush1.msra.mxu0 0.0
    %1244 = vmatprep.subr.mxu0 0.0
    %1245 = vmatpush1.msra.mxu0 0.0
    %1246 = vmatprep.subr.mxu0 0.0
    %1247 = vmatpush1.msra.mxu0 0.0
    %1248 = vmatprep.subr.mxu0 0.0
    %1249 = vmatpush1.msra.mxu0 0.0
    %1250 = vmatprep.subr.mxu0 0.0
    %1251 = vmatpush1.msra.mxu0 0.0
    %1252 = vmatprep.subr.mxu0 0.0
    %1253 = vmatpush1.msra.mxu0 0.0
    %1254 = vmatprep.subr.mxu0 0.0
    %1255 = vmatpush1.msra.mxu0 0.0
    %1256 = vmatprep.mubr.f32.mxu0 0.0
    %1257 = vmatmul.mubr.f32.gmra.mrb[0].mxu0 %v1190
    %v1258 = vpop.f32.mrb[0].mxu0
    %v1259 = vadd.f32 0.0, %v1258
    %v1260 = vpop.f32.mrb[0].mxu0
    %1261 = vdwg.mxu0
    %v1263 = vsel %vm435, %v1110, 0
    %1265 = vmatprep.subr.mxu0 0.0
    %1266 = vmatpush1.msra.mxu0 %v420
    %1267 = vmatprep.subr.mxu0 0.0
    %1268 = vmatpush1.msra.mxu0 0.0
    %1269 = vmatprep.subr.mxu0 0.0
    %1270 = vmatpush1.msra.mxu0 0.0
    %1271 = vmatprep.subr.mxu0 0.0
    %1272 = vmatpush1.msra.mxu0 0.0
    %1273 = vmatprep.subr.mxu0 0.0
    %1274 = vmatpush1.msra.mxu0 0.0
    %1275 = vmatprep.subr.mxu0 0.0
    %1276 = vmatpush1.msra.mxu0 0.0
    %1277 = vmatprep.subr.mxu0 0.0
    %1278 = vmatpush1.msra.mxu0 0.0
    %1279 = vmatprep.subr.mxu0 0.0
    %1280 = vmatpush1.msra.mxu0 0.0
    %1281 = vmatprep.subr.mxu0 0.0
    %1282 = vmatpush1.msra.mxu0 0.0
    %1283 = vmatprep.subr.mxu0 0.0
    %1284 = vmatpush1.msra.mxu0 0.0
    %1285 = vmatprep.subr.mxu0 0.0
    %1286 = vmatpush1.msra.mxu0 0.0
    %1287 = vmatprep.subr.mxu0 0.0
    %1288 = vmatpush1.msra.mxu0 0.0
    %1289 = vmatprep.subr.mxu0 0.0
    %1290 = vmatpush1.msra.mxu0 0.0
    %1291 = vmatprep.subr.mxu0 0.0
    %1292 = vmatpush1.msra.mxu0 0.0
    %1293 = vmatprep.subr.mxu0 0.0
    %1294 = vmatpush1.msra.mxu0 0.0
    %1295 = vmatprep.subr.mxu0 0.0
    %1296 = vmatpush1.msra.mxu0 0.0
    %1297 = vmatprep.subr.mxu0 0.0
    %1298 = vmatpush1.msra.mxu0 0.0
    %1299 = vmatprep.subr.mxu0 0.0
    %1300 = vmatpush1.msra.mxu0 0.0
    %1301 = vmatprep.subr.mxu0 0.0
    %1302 = vmatpush1.msra.mxu0 0.0
    %1303 = vmatprep.subr.mxu0 0.0
    %1304 = vmatpush1.msra.mxu0 0.0
    %1305 = vmatprep.subr.mxu0 0.0
    %1306 = vmatpush1.msra.mxu0 0.0
    %1307 = vmatprep.subr.mxu0 0.0
    %1308 = vmatpush1.msra.mxu0 0.0
    %1309 = vmatprep.subr.mxu0 0.0
    %1310 = vmatpush1.msra.mxu0 0.0
    %1311 = vmatprep.subr.mxu0 0.0
    %1312 = vmatpush1.msra.mxu0 0.0
    %1313 = vmatprep.subr.mxu0 0.0
    %1314 = vmatpush1.msra.mxu0 0.0
    %1315 = vmatprep.subr.mxu0 0.0
    %1316 = vmatpush1.msra.mxu0 0.0
    %1317 = vmatprep.subr.mxu0 0.0
    %1318 = vmatpush1.msra.mxu0 0.0
    %1319 = vmatprep.subr.mxu0 0.0
    %1320 = vmatpush1.msra.mxu0 0.0
    %1321 = vmatprep.subr.mxu0 0.0
    %1322 = vmatpush1.msra.mxu0 0.0
    %1323 = vmatprep.subr.mxu0 0.0
    %1324 = vmatpush1.msra.mxu0 0.0
    %1325 = vmatprep.subr.mxu0 0.0
    %1326 = vmatpush1.msra.mxu0 0.0
    %1327 = vmatprep.subr.mxu0 0.0
    %1328 = vmatpush1.msra.mxu0 0.0
    %1329 = vmatprep.mubr.f32.mxu0 0.0
    %1330 = vmatmul.mubr.f32.gmra.mrb[0].mxu0 %v1263
    %v1331 = vpop.f32.mrb[0].mxu0
    %v1332 = vadd.f32 0.0, %v1331
    %v1333 = vpop.f32.mrb[0].mxu0
    %1334 = vdwg.mxu0
    %v1336 = vsel %vm435, %v1111, 0
    %1338 = vmatprep.subr.mxu0 0.0
    %1339 = vmatpush1.msra.mxu0 %v423
    %1340 = vmatprep.subr.mxu0 0.0
    %1341 = vmatpush1.msra.mxu0 0.0
    %1342 = vmatprep.subr.mxu0 0.0
    %1343 = vmatpush1.msra.mxu0 0.0
    %1344 = vmatprep.subr.mxu0 0.0
    %1345 = vmatpush1.msra.mxu0 0.0
    %1346 = vmatprep.subr.mxu0 0.0
    %1347 = vmatpush1.msra.mxu0 0.0
    %1348 = vmatprep.subr.mxu0 0.0
    %1349 = vmatpush1.msra.mxu0 0.0
    %1350 = vmatprep.subr.mxu0 0.0
    %1351 = vmatpush1.msra.mxu0 0.0
    %1352 = vmatprep.subr.mxu0 0.0
    %1353 = vmatpush1.msra.mxu0 0.0
    %1354 = vmatprep.subr.mxu0 0.0
    %1355 = vmatpush1.msra.mxu0 0.0
    %1356 = vmatprep.subr.mxu0 0.0
    %1357 = vmatpush1.msra.mxu0 0.0
    %1358 = vmatprep.subr.mxu0 0.0
    %1359 = vmatpush1.msra.mxu0 0.0
    %1360 = vmatprep.subr.mxu0 0.0
    %1361 = vmatpush1.msra.mxu0 0.0
    %1362 = vmatprep.subr.mxu0 0.0
    %1363 = vmatpush1.msra.mxu0 0.0
    %1364 = vmatprep.subr.mxu0 0.0
    %1365 = vmatpush1.msra.mxu0 0.0
    %1366 = vmatprep.subr.mxu0 0.0
    %1367 = vmatpush1.msra.mxu0 0.0
    %1368 = vmatprep.subr.mxu0 0.0
    %1369 = vmatpush1.msra.mxu0 0.0
    %1370 = vmatprep.subr.mxu0 0.0
    %1371 = vmatpush1.msra.mxu0 0.0
    %1372 = vmatprep.subr.mxu0 0.0
    %1373 = vmatpush1.msra.mxu0 0.0
    %1374 = vmatprep.subr.mxu0 0.0
    %1375 = vmatpush1.msra.mxu0 0.0
    %1376 = vmatprep.subr.mxu0 0.0
    %1377 = vmatpush1.msra.mxu0 0.0
    %1378 = vmatprep.subr.mxu0 0.0
    %1379 = vmatpush1.msra.mxu0 0.0
    %1380 = vmatprep.subr.mxu0 0.0
    %1381 = vmatpush1.msra.mxu0 0.0
    %1382 = vmatprep.subr.mxu0 0.0
    %1383 = vmatpush1.msra.mxu0 0.0
    %1384 = vmatprep.subr.mxu0 0.0
    %1385 = vmatpush1.msra.mxu0 0.0
    %1386 = vmatprep.subr.mxu0 0.0
    %1387 = vmatpush1.msra.mxu0 0.0
    %1388 = vmatprep.subr.mxu0 0.0
    %1389 = vmatpush1.msra.mxu0 0.0
    %1390 = vmatprep.subr.mxu0 0.0
    %1391 = vmatpush1.msra.mxu0 0.0
    %1392 = vmatprep.subr.mxu0 0.0
    %1393 = vmatpush1.msra.mxu0 0.0
    %1394 = vmatprep.subr.mxu0 0.0
    %1395 = vmatpush1.msra.mxu0 0.0
    %1396 = vmatprep.subr.mxu0 0.0
    %1397 = vmatpush1.msra.mxu0 0.0
    %1398 = vmatprep.subr.mxu0 0.0
    %1399 = vmatpush1.msra.mxu0 0.0
    %1400 = vmatprep.subr.mxu0 0.0
    %1401 = vmatpush1.msra.mxu0 0.0
    %1402 = vmatprep.mubr.f32.mxu0 0.0
    %1403 = vmatmul.mubr.f32.gmra.mrb[0].mxu0 %v1336
    %v1404 = vpop.f32.mrb[0].mxu0
    %v1405 = vadd.f32 0.0, %v1404
    %v1406 = vpop.f32.mrb[0].mxu0
    %1407 = vdwg.mxu0
    %v1409 = vsel %vm435, %v1112, 0
    %1411 = vmatprep.subr.mxu0 0.0
    %1412 = vmatpush1.msra.mxu0 %v384
    %1413 = vmatprep.subr.mxu0 0.0
    %1414 = vmatpush1.msra.mxu0 0.0
    %1415 = vmatprep.subr.mxu0 0.0
    %1416 = vmatpush1.msra.mxu0 0.0
    %1417 = vmatprep.subr.mxu0 0.0
    %1418 = vmatpush1.msra.mxu0 0.0
    %1419 = vmatprep.subr.mxu0 0.0
    %1420 = vmatpush1.msra.mxu0 0.0
    %1421 = vmatprep.subr.mxu0 0.0
    %1422 = vmatpush1.msra.mxu0 0.0
    %1423 = vmatprep.subr.mxu0 0.0
    %1424 = vmatpush1.msra.mxu0 0.0
    %1425 = vmatprep.subr.mxu0 0.0
    %1426 = vmatpush1.msra.mxu0 0.0
    %1427 = vmatprep.subr.mxu0 0.0
    %1428 = vmatpush1.msra.mxu0 0.0
    %1429 = vmatprep.subr.mxu0 0.0
    %1430 = vmatpush1.msra.mxu0 0.0
    %1431 = vmatprep.subr.mxu0 0.0
    %1432 = vmatpush1.msra.mxu0 0.0
    %1433 = vmatprep.subr.mxu0 0.0
    %1434 = vmatpush1.msra.mxu0 0.0
    %1435 = vmatprep.subr.mxu0 0.0
    %1436 = vmatpush1.msra.mxu0 0.0
    %1437 = vmatprep.subr.mxu0 0.0
    %1438 = vmatpush1.msra.mxu0 0.0
    %1439 = vmatprep.subr.mxu0 0.0
    %1440 = vmatpush1.msra.mxu0 0.0
    %1441 = vmatprep.subr.mxu0 0.0
    %1442 = vmatpush1.msra.mxu0 0.0
    %1443 = vmatprep.subr.mxu0 0.0
    %1444 = vmatpush1.msra.mxu0 0.0
    %1445 = vmatprep.subr.mxu0 0.0
    %1446 = vmatpush1.msra.mxu0 0.0
    %1447 = vmatprep.subr.mxu0 0.0
    %1448 = vmatpush1.msra.mxu0 0.0
    %1449 = vmatprep.subr.mxu0 0.0
    %1450 = vmatpush1.msra.mxu0 0.0
    %1451 = vmatprep.subr.mxu0 0.0
    %1452 = vmatpush1.msra.mxu0 0.0
    %1453 = vmatprep.subr.mxu0 0.0
    %1454 = vmatpush1.msra.mxu0 0.0
    %1455 = vmatprep.subr.mxu0 0.0
    %1456 = vmatpush1.msra.mxu0 0.0
    %1457 = vmatprep.subr.mxu0 0.0
    %1458 = vmatpush1.msra.mxu0 0.0
    %1459 = vmatprep.subr.mxu0 0.0
    %1460 = vmatpush1.msra.mxu0 0.0
    %1461 = vmatprep.subr.mxu0 0.0
    %1462 = vmatpush1.msra.mxu0 0.0
    %1463 = vmatprep.subr.mxu0 0.0
    %1464 = vmatpush1.msra.mxu0 0.0
    %1465 = vmatprep.subr.mxu0 0.0
    %1466 = vmatpush1.msra.mxu0 0.0
    %1467 = vmatprep.subr.mxu0 0.0
    %1468 = vmatpush1.msra.mxu0 0.0
    %1469 = vmatprep.subr.mxu0 0.0
    %1470 = vmatpush1.msra.mxu0 0.0
    %1471 = vmatprep.subr.mxu0 0.0
    %1472 = vmatpush1.msra.mxu0 0.0
    %1473 = vmatprep.subr.mxu0 0.0
    %1474 = vmatpush1.msra.mxu0 0.0
    %1475 = vmatprep.mubr.f32.mxu0 0.0
    %1476 = vmatmul.mubr.f32.gmra.mrb[0].mxu0 %v1409
    %v1477 = vpop.f32.mrb[0].mxu0
    %v1478 = vadd.f32 0.0, %v1477
    %v1479 = vpop.f32.mrb[0].mxu0
    %1480 = vdwg.mxu0
    %v1482 = vsel %vm435, %v1113, 0
    %1484 = vmatprep.subr.mxu0 0.0
    %1485 = vmatpush1.msra.mxu0 %v427
    %1486 = vmatprep.subr.mxu0 0.0
    %1487 = vmatpush1.msra.mxu0 0.0
    %1488 = vmatprep.subr.mxu0 0.0
    %1489 = vmatpush1.msra.mxu0 0.0
    %1490 = vmatprep.subr.mxu0 0.0
    %1491 = vmatpush1.msra.mxu0 0.0
    %1492 = vmatprep.subr.mxu0 0.0
    %1493 = vmatpush1.msra.mxu0 0.0
    %1494 = vmatprep.subr.mxu0 0.0
    %1495 = vmatpush1.msra.mxu0 0.0
    %1496 = vmatprep.subr.mxu0 0.0
    %1497 = vmatpush1.msra.mxu0 0.0
    %1498 = vmatprep.subr.mxu0 0.0
    %1499 = vmatpush1.msra.mxu0 0.0
    %1500 = vmatprep.subr.mxu0 0.0
    %1501 = vmatpush1.msra.mxu0 0.0
    %1502 = vmatprep.subr.mxu0 0.0
    %1503 = vmatpush1.msra.mxu0 0.0
    %1504 = vmatprep.subr.mxu0 0.0
    %1505 = vmatpush1.msra.mxu0 0.0
    %1506 = vmatprep.subr.mxu0 0.0
    %1507 = vmatpush1.msra.mxu0 0.0
    %1508 = vmatprep.subr.mxu0 0.0
    %1509 = vmatpush1.msra.mxu0 0.0
    %1510 = vmatprep.subr.mxu0 0.0
    %1511 = vmatpush1.msra.mxu0 0.0
    %1512 = vmatprep.subr.mxu0 0.0
    %1513 = vmatpush1.msra.mxu0 0.0
    %1514 = vmatprep.subr.mxu0 0.0
    %1515 = vmatpush1.msra.mxu0 0.0
    %1516 = vmatprep.subr.mxu0 0.0
    %1517 = vmatpush1.msra.mxu0 0.0
    %1518 = vmatprep.subr.mxu0 0.0
    %1519 = vmatpush1.msra.mxu0 0.0
    %1520 = vmatprep.subr.mxu0 0.0
    %1521 = vmatpush1.msra.mxu0 0.0
    %1522 = vmatprep.subr.mxu0 0.0
    %1523 = vmatpush1.msra.mxu0 0.0
    %1524 = vmatprep.subr.mxu0 0.0
    %1525 = vmatpush1.msra.mxu0 0.0
    %1526 = vmatprep.subr.mxu0 0.0
    %1527 = vmatpush1.msra.mxu0 0.0
    %1528 = vmatprep.subr.mxu0 0.0
    %1529 = vmatpush1.msra.mxu0 0.0
    %1530 = vmatprep.subr.mxu0 0.0
    %1531 = vmatpush1.msra.mxu0 0.0
    %1532 = vmatprep.subr.mxu0 0.0
    %1533 = vmatpush1.msra.mxu0 0.0
    %1534 = vmatprep.subr.mxu0 0.0
    %1535 = vmatpush1.msra.mxu0 0.0
    %1536 = vmatprep.subr.mxu0 0.0
    %1537 = vmatpush1.msra.mxu0 0.0
    %1538 = vmatprep.subr.mxu0 0.0
    %1539 = vmatpush1.msra.mxu0 0.0
    %1540 = vmatprep.subr.mxu0 0.0
    %1541 = vmatpush1.msra.mxu0 0.0
    %1542 = vmatprep.subr.mxu0 0.0
    %1543 = vmatpush1.msra.mxu0 0.0
    %1544 = vmatprep.subr.mxu0 0.0
    %1545 = vmatpush1.msra.mxu0 0.0
    %1546 = vmatprep.subr.mxu0 0.0
    %1547 = vmatpush1.msra.mxu0 0.0
    %1548 = vmatprep.mubr.f32.mxu0 0.0
    %1549 = vmatmul.mubr.f32.gmra.mrb[0].mxu0 %v1482
    %v1550 = vpop.f32.mrb[0].mxu0
    %v1551 = vadd.f32 0.0, %v1550
    %v1552 = vpop.f32.mrb[0].mxu0
    %1553 = vdwg.mxu0
    %v1555 = vsel %vm435, %v1114, 0
    %1557 = vmatprep.subr.mxu0 0.0
    %1558 = vmatpush1.msra.mxu0 %v430
    %1559 = vmatprep.subr.mxu0 0.0
    %1560 = vmatpush1.msra.mxu0 0.0
    %1561 = vmatprep.subr.mxu0 0.0
    %1562 = vmatpush1.msra.mxu0 0.0
    %1563 = vmatprep.subr.mxu0 0.0
    %1564 = vmatpush1.msra.mxu0 0.0
    %1565 = vmatprep.subr.mxu0 0.0
    %1566 = vmatpush1.msra.mxu0 0.0
    %1567 = vmatprep.subr.mxu0 0.0
    %1568 = vmatpush1.msra.mxu0 0.0
    %1569 = vmatprep.subr.mxu0 0.0
    %1570 = vmatpush1.msra.mxu0 0.0
    %1571 = vmatprep.subr.mxu0 0.0
    %1572 = vmatpush1.msra.mxu0 0.0
    %1573 = vmatprep.subr.mxu0 0.0
    %1574 = vmatpush1.msra.mxu0 0.0
    %1575 = vmatprep.subr.mxu0 0.0
    %1576 = vmatpush1.msra.mxu0 0.0
    %1577 = vmatprep.subr.mxu0 0.0
    %1578 = vmatpush1.msra.mxu0 0.0
    %1579 = vmatprep.subr.mxu0 0.0
    %1580 = vmatpush1.msra.mxu0 0.0
    %1581 = vmatprep.subr.mxu0 0.0
    %1582 = vmatpush1.msra.mxu0 0.0
    %1583 = vmatprep.subr.mxu0 0.0
    %1584 = vmatpush1.msra.mxu0 0.0
    %1585 = vmatprep.subr.mxu0 0.0
    %1586 = vmatpush1.msra.mxu0 0.0
    %1587 = vmatprep.subr.mxu0 0.0
    %1588 = vmatpush1.msra.mxu0 0.0
    %1589 = vmatprep.subr.mxu0 0.0
    %1590 = vmatpush1.msra.mxu0 0.0
    %1591 = vmatprep.subr.mxu0 0.0
    %1592 = vmatpush1.msra.mxu0 0.0
    %1593 = vmatprep.subr.mxu0 0.0
    %1594 = vmatpush1.msra.mxu0 0.0
    %1595 = vmatprep.subr.mxu0 0.0
    %1596 = vmatpush1.msra.mxu0 0.0
    %1597 = vmatprep.subr.mxu0 0.0
    %1598 = vmatpush1.msra.mxu0 0.0
    %1599 = vmatprep.subr.mxu0 0.0
    %1600 = vmatpush1.msra.mxu0 0.0
    %1601 = vmatprep.subr.mxu0 0.0
    %1602 = vmatpush1.msra.mxu0 0.0
    %1603 = vmatprep.subr.mxu0 0.0
    %1604 = vmatpush1.msra.mxu0 0.0
    %1605 = vmatprep.subr.mxu0 0.0
    %1606 = vmatpush1.msra.mxu0 0.0
    %1607 = vmatprep.subr.mxu0 0.0
    %1608 = vmatpush1.msra.mxu0 0.0
    %1609 = vmatprep.subr.mxu0 0.0
    %1610 = vmatpush1.msra.mxu0 0.0
    %1611 = vmatprep.subr.mxu0 0.0
    %1612 = vmatpush1.msra.mxu0 0.0
    %1613 = vmatprep.subr.mxu0 0.0
    %1614 = vmatpush1.msra.mxu0 0.0
    %1615 = vmatprep.subr.mxu0 0.0
    %1616 = vmatpush1.msra.mxu0 0.0
    %1617 = vmatprep.subr.mxu0 0.0
    %1618 = vmatpush1.msra.mxu0 0.0
    %1619 = vmatprep.subr.mxu0 0.0
    %1620 = vmatpush1.msra.mxu0 0.0
    %1621 = vmatprep.mubr.f32.mxu0 0.0
    %1622 = vmatmul.mubr.f32.gmra.mrb[0].mxu0 %v1555
    %v1623 = vpop.f32.mrb[0].mxu0
    %v1624 = vadd.f32 0.0, %v1623
    %v1625 = vpop.f32.mrb[0].mxu0
    %1626 = vdwg.mxu0
    %v1628 = vsel %vm435, %v1115, 0
    %1630 = vmatprep.subr.mxu0 0.0
    %1631 = vmatpush1.msra.mxu0 %v433
    %1632 = vmatprep.subr.mxu0 0.0
    %1633 = vmatpush1.msra.mxu0 0.0
    %1634 = vmatprep.subr.mxu0 0.0
    %1635 = vmatpush1.msra.mxu0 0.0
    %1636 = vmatprep.subr.mxu0 0.0
    %1637 = vmatpush1.msra.mxu0 0.0
    %1638 = vmatprep.subr.mxu0 0.0
    %1639 = vmatpush1.msra.mxu0 0.0
    %1640 = vmatprep.subr.mxu0 0.0
    %1641 = vmatpush1.msra.mxu0 0.0
    %1642 = vmatprep.subr.mxu0 0.0
    %1643 = vmatpush1.msra.mxu0 0.0
    %1644 = vmatprep.subr.mxu0 0.0
    %1645 = vmatpush1.msra.mxu0 0.0
    %1646 = vmatprep.subr.mxu0 0.0
    %1647 = vmatpush1.msra.mxu0 0.0
    %1648 = vmatprep.subr.mxu0 0.0
    %1649 = vmatpush1.msra.mxu0 0.0
    %1650 = vmatprep.subr.mxu0 0.0
    %1651 = vmatpush1.msra.mxu0 0.0
    %1652 = vmatprep.subr.mxu0 0.0
    %1653 = vmatpush1.msra.mxu0 0.0
    %1654 = vmatprep.subr.mxu0 0.0
    %1655 = vmatpush1.msra.mxu0 0.0
    %1656 = vmatprep.subr.mxu0 0.0
    %1657 = vmatpush1.msra.mxu0 0.0
    %1658 = vmatprep.subr.mxu0 0.0
    %1659 = vmatpush1.msra.mxu0 0.0
    %1660 = vmatprep.subr.mxu0 0.0
    %1661 = vmatpush1.msra.mxu0 0.0
    %1662 = vmatprep.subr.mxu0 0.0
    %1663 = vmatpush1.msra.mxu0 0.0
    %1664 = vmatprep.subr.mxu0 0.0
    %1665 = vmatpush1.msra.mxu0 0.0
    %1666 = vmatprep.subr.mxu0 0.0
    %1667 = vmatpush1.msra.mxu0 0.0
    %1668 = vmatprep.subr.mxu0 0.0
    %1669 = vmatpush1.msra.mxu0 0.0
    %1670 = vmatprep.subr.mxu0 0.0
    %1671 = vmatpush1.msra.mxu0 0.0
    %1672 = vmatprep.subr.mxu0 0.0
    %1673 = vmatpush1.msra.mxu0 0.0
    %1674 = vmatprep.subr.mxu0 0.0
    %1675 = vmatpush1.msra.mxu0 0.0
    %1676 = vmatprep.subr.mxu0 0.0
    %1677 = vmatpush1.msra.mxu0 0.0
    %1678 = vmatprep.subr.mxu0 0.0
    %1679 = vmatpush1.msra.mxu0 0.0
    %1680 = vmatprep.subr.mxu0 0.0
    %1681 = vmatpush1.msra.mxu0 0.0
    %1682 = vmatprep.subr.mxu0 0.0
    %1683 = vmatpush1.msra.mxu0 0.0
    %1684 = vmatprep.subr.mxu0 0.0
    %1685 = vmatpush1.msra.mxu0 0.0
    %1686 = vmatprep.subr.mxu0 0.0
    %1687 = vmatpush1.msra.mxu0 0.0
    %1688 = vmatprep.subr.mxu0 0.0
    %1689 = vmatpush1.msra.mxu0 0.0
    %1690 = vmatprep.subr.mxu0 0.0
    %1691 = vmatpush1.msra.mxu0 0.0
    %1692 = vmatprep.subr.mxu0 0.0
    %1693 = vmatpush1.msra.mxu0 0.0
    %1694 = vmatprep.mubr.f32.mxu0 0.0
    %1695 = vmatmul.mubr.f32.gmra.mrb[0].mxu0 %v1628
    %v1696 = vpop.f32.mrb[0].mxu0
    %v1697 = vadd.f32 0.0, %v1696
    %v1698 = vpop.f32.mrb[0].mxu0
    %1699 = vdwg.mxu0
    %1700 = vst.msk [vmem:[#allocation2] sm:$0xff] %vm435, %v1186
    %1702 = vrot.lane.b32.xlu0 %v1259, 8
    %v1703 = vpop.permute.xlu0 %1702
    %vm1705 = vcmask 130112
    %1706 = vst.msk [vmem:[#allocation2] sm:$0xff] %vm1705, %v1703
    %1708 = vrot.lane.b32.xlu0 %v1332, 16
    %v1709 = vpop.permute.xlu0 %1708
    %vm1711 = vcmask 195712
    %1712 = vst.msk [vmem:[#allocation2] sm:$0xff] %vm1711, %v1709
    %1714 = vrot.lane.b32.xlu0 %v1405, 24
    %v1715 = vpop.permute.xlu0 %1714
    %vm1717 = vcmask 261312
    %1718 = vst.msk [vmem:[#allocation2] sm:$0xff] %vm1717, %v1715
    %1719 = vst.msk [vmem:[#allocation2 + $0x8] sm:$0xff] %vm435, %v1478
    %1721 = vrot.lane.b32.xlu0 %v1551, 8
    %v1722 = vpop.permute.xlu0 %1721
    %1724 = vst.msk [vmem:[#allocation2 + $0x8] sm:$0xff] %vm1705, %v1722
    %1726 = vrot.lane.b32.xlu0 %v1624, 16
    %v1727 = vpop.permute.xlu0 %1726
    %1729 = vst.msk [vmem:[#allocation2 + $0x8] sm:$0xff] %vm1711, %v1727
    %1731 = vrot.lane.b32.xlu0 %v1697, 24
    %v1732 = vpop.permute.xlu0 %1731
    %1734 = vst.msk [vmem:[#allocation2 + $0x8] sm:$0xff] %vm1717, %v1732
    %v1735 = vld [vmem:[#allocation2] sm:$0xff]
    %v1736 = vld [vmem:[#allocation2 + $0x8] sm:$0xff]
    %v1737 = vld [vmem:[#allocation14] sm:$0xff]
    %v1738 = vld [vmem:[#allocation14 + $0x8] sm:$0xff]
    %v1739 = vld [vmem:[#allocation14 + $0x10] sm:$0xff]
    %v1740 = vld [vmem:[#allocation14 + $0x18] sm:$0xff]
    %v1741 = vld [vmem:[%s7] sm:$0x1]
    %v1743 = vlaneseq
    %v1744 = vshrl.u32 %v1743, 7
    %v1745 = vsub.s32 0, %v1744
    %v1746 = vrot.slane %v1741, %v1745
    %v1749 = vsel %vm135, %v1735, 0
    %v1752 = vsel %vm135, %v1736, 0
    %1754 = vmatprep.subr.mxu0 0.0
    %1755 = vmatpush1.msra.mxu0 %v1737
    %1756 = vmatprep.subr.mxu0 0.0
    %1757 = vmatpush1.msra.mxu0 %v1738
    %1758 = vmatprep.subr.mxu0 0.0
    %1759 = vmatpush1.msra.mxu0 %v1739
    %1760 = vmatprep.subr.mxu0 0.0
    %1761 = vmatpush1.msra.mxu0 %v1740
    %1762 = vmatprep.subr.mxu0 0.0
    %1763 = vmatpush1.msra.mxu0 0.0
    %1764 = vmatprep.subr.mxu0 0.0
    %1765 = vmatpush1.msra.mxu0 0.0
    %1766 = vmatprep.subr.mxu0 0.0
    %1767 = vmatpush1.msra.mxu0 0.0
    %1768 = vmatprep.subr.mxu0 0.0
    %1769 = vmatpush1.msra.mxu0 0.0
    %1770 = vmatprep.subr.mxu0 0.0
    %1771 = vmatpush1.msra.mxu0 0.0
    %1772 = vmatprep.subr.mxu0 0.0
    %1773 = vmatpush1.msra.mxu0 0.0
    %1774 = vmatprep.subr.mxu0 0.0
    %1775 = vmatpush1.msra.mxu0 0.0
    %1776 = vmatprep.subr.mxu0 0.0
    %1777 = vmatpush1.msra.mxu0 0.0
    %1778 = vmatprep.subr.mxu0 0.0
    %1779 = vmatpush1.msra.mxu0 0.0
    %1780 = vmatprep.subr.mxu0 0.0
    %1781 = vmatpush1.msra.mxu0 0.0
    %1782 = vmatprep.subr.mxu0 0.0
    %1783 = vmatpush1.msra.mxu0 0.0
    %1784 = vmatprep.subr.mxu0 0.0
    %1785 = vmatpush1.msra.mxu0 0.0
    %1786 = vmatprep.subr.mxu0 0.0
    %1787 = vmatpush1.msra.mxu0 0.0
    %1788 = vmatprep.subr.mxu0 0.0
    %1789 = vmatpush1.msra.mxu0 0.0
    %1790 = vmatprep.subr.mxu0 0.0
    %1791 = vmatpush1.msra.mxu0 0.0
    %1792 = vmatprep.subr.mxu0 0.0
    %1793 = vmatpush1.msra.mxu0 0.0
    %1794 = vmatprep.subr.mxu0 0.0
    %1795 = vmatpush1.msra.mxu0 0.0
    %1796 = vmatprep.subr.mxu0 0.0
    %1797 = vmatpush1.msra.mxu0 0.0
    %1798 = vmatprep.subr.mxu0 0.0
    %1799 = vmatpush1.msra.mxu0 0.0
    %1800 = vmatprep.subr.mxu0 0.0
    %1801 = vmatpush1.msra.mxu0 0.0
    %1802 = vmatprep.subr.mxu0 0.0
    %1803 = vmatpush1.msra.mxu0 0.0
    %1804 = vmatprep.subr.mxu0 0.0
    %1805 = vmatpush1.msra.mxu0 0.0
    %1806 = vmatprep.subr.mxu0 0.0
    %1807 = vmatpush1.msra.mxu0 0.0
    %1808 = vmatprep.subr.mxu0 0.0
    %1809 = vmatpush1.msra.mxu0 0.0
    %1810 = vmatprep.subr.mxu0 0.0
    %1811 = vmatpush1.msra.mxu0 0.0
    %1812 = vmatprep.subr.mxu0 0.0
    %1813 = vmatpush1.msra.mxu0 0.0
    %1814 = vmatprep.subr.mxu0 0.0
    %1815 = vmatpush1.msra.mxu0 0.0
    %1816 = vmatprep.subr.mxu0 0.0
    %1817 = vmatpush1.msra.mxu0 0.0
    %1818 = vmatprep.mubr.f32.mxu0 0.0
    %1819 = vmatmul.mubr.f32.gmra.mrb[0].mxu0 %v1749
    %v1820 = vpop.f32.mrb[0].mxu0
    %v1821 = vadd.f32 %v1746, %v1820
    %v1822 = vpop.f32.mrb[0].mxu0
    %1823 = vmatprep.mubr.f32.mxu0 0.0
    %1824 = vmatmul.mubr.f32.gmra.mrb[0].mxu0 %v1752
    %v1825 = vpop.f32.mrb[0].mxu0
    %v1826 = vadd.f32 %v1746, %v1825
    %v1827 = vpop.f32.mrb[0].mxu0
    %1828 = vdwg.mxu0
    %1829 = vst.msk [vmem:[#allocation15] sm:$0xff] %vm135, %v1821
    %1830 = vst.msk [vmem:[#allocation15 + $0x8] sm:$0xff] %vm135, %v1826
    // Predicated region
    $region62: #{tpu_custom_call.1} parent=1 // pred_check
      _
    $region63: #{tpu_custom_call.1} parent=1 // pred_check_branch
      %1832 = sbr.rel (0) target = $region65
    $region64: #{tpu_custom_call.1} parent=1 // pred_region
      %s1834 = ssub.s32 256, 256
      %1835 = vsyncadd [#allocation5], %s1834
      %s1836 = sshll.u32 [#allocation15], 4
      %s1837 = int_to_ptr.vmem [resolvable:$true] %s1836
      %1842 = dma.vmem_to_hbm [thread:$0]  %s1837, 256, %s8, [#allocation5], 128, 128, 8
    $region65: #{tpu_custom_call.1} parent=1 // pred_fallthru
      _
    // Predicated region
    $region66: #{tpu_custom_call.1} parent=1 // pred_check
      _
    $region67: #{tpu_custom_call.1} parent=1 // pred_check_branch
      %1844 = sbr.rel (0) target = $region69
    $region68: #{tpu_custom_call.1} parent=1 // pred_region
      %1845 = dma.done [#allocation5], 256
    $region69: #{tpu_custom_call.1} parent=1 // pred_fallthru
      _
    %1846 = vsyncpa [#allocation4], 1
    %1847 = vsyncpa [#allocation7], 1
    %1848 = vsyncpa [#allocation10], 1
    %1849 = vsyncpa [#allocation13], 1
    %1850 = vsyncpa [#allocation5], 1

</llo_original>
